<compile_context>
chip_gen: v6e
topology: v6e:2x2x1
jax: 0.10.0
libtpu: 0.0.40
codegen_flags: <defaults>
</compile_context>

<pallas_src>
import functools

import jax
import jax.numpy as jnp
from jax import lax
from jax.experimental import pallas as pl
from jax.experimental.pallas import tpu as pltpu

NEG_SLOPE = 0.01   # nn.LeakyReLU default negative_slope
LANE = 128


def _leaky_relu(x):
    return jnp.where(x > 0, x, NEG_SLOPE * x)


def dnn_kernel(x_ref,
               w1_ref, b1_ref,
               w2_ref, b2_ref,
               w3_ref, b3_ref,
               w4_ref, b4_ref,
               o_ref, *, d_out):
    x = x_ref[...]  # bf16 [tile_m, D_in]

    # Hidden layer 1: Linear (bf16 MXU, f32 accum) + LeakyReLU (f32 VPU)
    h = jnp.dot(x, w1_ref[...], preferred_element_type=jnp.float32) + b1_ref[...]
    h = _leaky_relu(h).astype(jnp.bfloat16)
    # TODO(synk): nn.Dropout(p=0.2) in train mode would need pltpu.prng_random_bits;
    # inference semantics (identity) are implemented here.

    # Hidden layer 2
    h = jnp.dot(h, w2_ref[...], preferred_element_type=jnp.float32) + b2_ref[...]
    h = _leaky_relu(h).astype(jnp.bfloat16)

    # Hidden layer 3
    h = jnp.dot(h, w3_ref[...], preferred_element_type=jnp.float32) + b3_ref[...]
    h = _leaky_relu(h).astype(jnp.bfloat16)

    # Output layer (lane-padded to a multiple of 128 columns)
    logits = jnp.dot(h, w4_ref[...], preferred_element_type=jnp.float32) + b4_ref[...]

    # Mask the padded columns out of the softmax.
    col = lax.broadcasted_iota(jnp.int32, logits.shape, 1)
    logits = jnp.where(col < d_out, logits, -jnp.inf)

    # softmax over the last dim (F.softmax(..., dim=-1)), computed in f32
    m = jnp.max(logits, axis=-1, keepdims=True)
    e = jnp.exp(logits - m)
    denom = jnp.sum(e, axis=-1, keepdims=True)
    o_ref[...] = (e * pl.reciprocal(denom, approx=True)).astype(o_ref.dtype)


def dnn_forward(x, params, *, tile_m=256):
    """x: [B, D_in] float32.  params: dict of W1..W4 (f32), b1..b4 (f32)."""
    B, D_in = x.shape
    W4 = params["W4"]
    d_out = W4.shape[1]

    # Lane-pad the output layer to a multiple of 128 for unmasked lane-dense stores.
    d_out_pad = max(LANE, pl.cdiv(d_out, LANE) * LANE)
    W4p = jnp.pad(W4, ((0, 0), (0, d_out_pad - d_out)))
    b4p = jnp.pad(params["b4"], ((0, 0), (0, d_out_pad - d_out)))

    # Pre-cast weights to bf16 once (MXU operands); biases stay f32 (added to f32 accum).
    Ws = [params["W1"].astype(jnp.bfloat16),
          params["W2"].astype(jnp.bfloat16),
          params["W3"].astype(jnp.bfloat16),
          W4p.astype(jnp.bfloat16)]
    bs = [params["b1"], params["b2"], params["b3"], b4p]

    # Batch tiling: clamp the tile for tiny batches, pad B up to a multiple of tile_m.
    tile_m = max(8, min(tile_m, pl.cdiv(B, 8) * 8))
    B_pad = pl.cdiv(B, tile_m) * tile_m
    xp = x.astype(jnp.bfloat16)
    if B_pad != B:
        xp = jnp.pad(xp, ((0, B_pad - B), (0, 0)))

    def invariant(arr):
        # weight / bias blocks: one full-array block, same block for every grid step
        return pl.BlockSpec(arr.shape, lambda i: (0,) * arr.ndim)

    out = pl.pallas_call(
        functools.partial(dnn_kernel, d_out=d_out),
        out_shape=jax.ShapeDtypeStruct((B_pad, d_out_pad), jnp.float32),
        grid_spec=pltpu.PrefetchScalarGridSpec(
            num_scalar_prefetch=0,
            grid=(B_pad // tile_m,),
            in_specs=[
                pl.BlockSpec((tile_m, D_in), lambda i: (i, 0)),
                invariant(Ws[0]), invariant(bs[0]),
                invariant(Ws[1]), invariant(bs[1]),
                invariant(Ws[2]), invariant(bs[2]),
                invariant(Ws[3]), invariant(bs[3]),
            ],
            out_specs=pl.BlockSpec((tile_m, d_out_pad), lambda i: (i, 0)),
        ),
        compiler_params=pltpu.CompilerParams(
            dimension_semantics=("parallel",)),
    )(xp, Ws[0], bs[0], Ws[1], bs[1], Ws[2], bs[2], Ws[3], bs[3])

    return out[:B, :d_out]


def make_params(key, input_dim, hidden_dims, output_dim):
    dims = [input_dim] + list(hidden_dims) + [output_dim]
    params = {}
    for li in range(len(dims) - 1):
        key, kw, kb = jax.random.split(key, 3)
        fan_in = dims[li]
        bound = 1.0 / jnp.sqrt(fan_in)  # same scale as torch nn.Linear default init
        W = jax.random.uniform(kw, (dims[li], dims[li + 1]),
                               minval=-bound, maxval=bound, dtype=jnp.float32)
        b = jax.random.uniform(kb, (1, dims[li + 1]),
                               minval=-bound, maxval=bound, dtype=jnp.float32)
        params[f"W{li + 1}"] = W
        params[f"b{li + 1}"] = b
    return params


def dnn_reference(x, params):
    h = x
    for li in range(1, 4):
        h = h @ params[f"W{li}"] + params[f"b{li}"]
        h = jnp.where(h > 0, h, NEG_SLOPE * h)
    logits = h @ params["W4"] + params["b4"]
    return jax.nn.softmax(logits, axis=-1)


if __name__ == "__main__":
    # Small shapes consistent with the module structure:
    # input_dim=128, hidden_dim=[128, 256, 128], output_dim=8, batch=512
    # (tile_m=256 -> grid of 2 "parallel" steps, so both v7x TCs get work)
    B, D_in = 512, 128
    hidden = [128, 256, 128]
    D_out = 8

    key = jax.random.PRNGKey(0)
    kx, kp = jax.random.split(key)
    x = jax.random.normal(kx, (B, D_in), dtype=jnp.float32)
    params = make_params(kp, D_in, hidden, D_out)

    out = dnn_forward(x, params, tile_m=256)
    out = jax.block_until_ready(out)

    ref = dnn_reference(x, params)   # f32 reference
    assert out.shape == (B, D_out)
    # bf16 matmul operands + approx reciprocal -> loosened tolerance vs f32 ref
    assert jnp.allclose(jnp.sum(out, axis=-1), 1.0, atol=1e-3), "softmax rows must sum to 1"
    max_err = float(jnp.max(jnp.abs(out - ref)))
    assert max_err < 3e-2, f"mismatch vs reference: max abs err {max_err}"

    print("KERNEL_OK")
</pallas_src>

<mosaic_0001>
module attributes {stable_mosaic.version = 11 : i64} {
  func.func @dnn_kernel(%arg0: i32, %arg1: memref<256x128xbf16, #tpu.memory_space<vmem>>, %arg2: memref<128x128xbf16, #tpu.memory_space<vmem>>, %arg3: memref<1x128xf32, #tpu.memory_space<vmem>>, %arg4: memref<128x256xbf16, #tpu.memory_space<vmem>>, %arg5: memref<1x256xf32, #tpu.memory_space<vmem>>, %arg6: memref<256x128xbf16, #tpu.memory_space<vmem>>, %arg7: memref<1x128xf32, #tpu.memory_space<vmem>>, %arg8: memref<128x128xbf16, #tpu.memory_space<vmem>>, %arg9: memref<1x128xf32, #tpu.memory_space<vmem>>, %arg10: memref<256x128xf32, #tpu.memory_space<vmem>>) attributes {dimension_semantics = [#tpu.dimension_semantics<parallel>], iteration_bounds = array<i64: 2>, scalar_prefetch = 0 : i64, scratch_operands = 0 : i64, tpu.core_type = #tpu.core_type<tc>, window_params = [{transform_indices = @transform_0, window_bounds = array<i64: 256, 128>}, {pipeline_mode = #tpu.pipeline_mode<synchronous>, transform_indices = @transform_1, window_bounds = array<i64: 128, 128>}, {pipeline_mode = #tpu.pipeline_mode<synchronous>, transform_indices = @transform_2, window_bounds = array<i64: 1, 128>}, {pipeline_mode = #tpu.pipeline_mode<synchronous>, transform_indices = @transform_3, window_bounds = array<i64: 128, 256>}, {pipeline_mode = #tpu.pipeline_mode<synchronous>, transform_indices = @transform_4, window_bounds = array<i64: 1, 256>}, {pipeline_mode = #tpu.pipeline_mode<synchronous>, transform_indices = @transform_5, window_bounds = array<i64: 256, 128>}, {pipeline_mode = #tpu.pipeline_mode<synchronous>, transform_indices = @transform_6, window_bounds = array<i64: 1, 128>}, {pipeline_mode = #tpu.pipeline_mode<synchronous>, transform_indices = @transform_7, window_bounds = array<i64: 128, 128>}, {pipeline_mode = #tpu.pipeline_mode<synchronous>, transform_indices = @transform_8, window_bounds = array<i64: 1, 128>}, {transform_indices = @transform_9, window_bounds = array<i64: 256, 128>}]} {
    %c0 = arith.constant 0 : index
    %c0_0 = arith.constant 0 : index
    %0 = vector.load %arg1[%c0, %c0_0] : memref<256x128xbf16, #tpu.memory_space<vmem>>, vector<256x128xbf16>
    %c0_1 = arith.constant 0 : index
    %c0_2 = arith.constant 0 : index
    %1 = vector.load %arg2[%c0_1, %c0_2] : memref<128x128xbf16, #tpu.memory_space<vmem>>, vector<128x128xbf16>
    %cst = arith.constant dense<0.000000e+00> : vector<256x128xf32>
    %2 = tpu.matmul %0, %1, %cst {dimension_numbers = #tpu.dot_dimension_numbers<[1], [0], [0], [1], [0, 0, 1, 1], [], []>} : vector<256x128xbf16>, vector<128x128xbf16>, vector<256x128xf32> -> vector<256x128xf32>
    %c0_3 = arith.constant 0 : index
    %c0_4 = arith.constant 0 : index
    %3 = vector.load %arg3[%c0_3, %c0_4] : memref<1x128xf32, #tpu.memory_space<vmem>>, vector<1x128xf32>
    %4 = vector.broadcast %3 : vector<1x128xf32> to vector<256x128xf32>
    %5 = arith.addf %2, %4 : vector<256x128xf32>
    %cst_5 = arith.constant 0.000000e+00 : f32
    %6 = vector.broadcast %cst_5 : f32 to vector<256x128xf32>
    %7 = arith.cmpf ogt, %5, %6 : vector<256x128xf32>
    %cst_6 = arith.constant 0.00999999977 : f32
    %8 = vector.broadcast %cst_6 : f32 to vector<256x128xf32>
    %9 = arith.mulf %8, %5 : vector<256x128xf32>
    %10 = arith.select %7, %5, %9 : vector<256x128xi1>, vector<256x128xf32>
    %11 = arith.truncf %10 : vector<256x128xf32> to vector<256x128xbf16>
    %c0_7 = arith.constant 0 : index
    %c0_8 = arith.constant 0 : index
    %12 = vector.load %arg4[%c0_7, %c0_8] : memref<128x256xbf16, #tpu.memory_space<vmem>>, vector<128x256xbf16>
    %cst_9 = arith.constant dense<0.000000e+00> : vector<256x256xf32>
    %13 = tpu.matmul %11, %12, %cst_9 {dimension_numbers = #tpu.dot_dimension_numbers<[1], [0], [0], [1], [0, 0, 1, 1], [], []>} : vector<256x128xbf16>, vector<128x256xbf16>, vector<256x256xf32> -> vector<256x256xf32>
    %c0_10 = arith.constant 0 : index
    %c0_11 = arith.constant 0 : index
    %14 = vector.load %arg5[%c0_10, %c0_11] : memref<1x256xf32, #tpu.memory_space<vmem>>, vector<1x256xf32>
    %15 = vector.broadcast %14 : vector<1x256xf32> to vector<256x256xf32>
    %16 = arith.addf %13, %15 : vector<256x256xf32>
    %cst_12 = arith.constant 0.000000e+00 : f32
    %17 = vector.broadcast %cst_12 : f32 to vector<256x256xf32>
    %18 = arith.cmpf ogt, %16, %17 : vector<256x256xf32>
    %cst_13 = arith.constant 0.00999999977 : f32
    %19 = vector.broadcast %cst_13 : f32 to vector<256x256xf32>
    %20 = arith.mulf %19, %16 : vector<256x256xf32>
    %21 = arith.select %18, %16, %20 : vector<256x256xi1>, vector<256x256xf32>
    %22 = arith.truncf %21 : vector<256x256xf32> to vector<256x256xbf16>
    %c0_14 = arith.constant 0 : index
    %c0_15 = arith.constant 0 : index
    %23 = vector.load %arg6[%c0_14, %c0_15] : memref<256x128xbf16, #tpu.memory_space<vmem>>, vector<256x128xbf16>
    %cst_16 = arith.constant dense<0.000000e+00> : vector<256x128xf32>
    %24 = tpu.matmul %22, %23, %cst_16 {dimension_numbers = #tpu.dot_dimension_numbers<[1], [0], [0], [1], [0, 0, 1, 1], [], []>} : vector<256x256xbf16>, vector<256x128xbf16>, vector<256x128xf32> -> vector<256x128xf32>
    %c0_17 = arith.constant 0 : index
    %c0_18 = arith.constant 0 : index
    %25 = vector.load %arg7[%c0_17, %c0_18] : memref<1x128xf32, #tpu.memory_space<vmem>>, vector<1x128xf32>
    %26 = vector.broadcast %25 : vector<1x128xf32> to vector<256x128xf32>
    %27 = arith.addf %24, %26 : vector<256x128xf32>
    %cst_19 = arith.constant 0.000000e+00 : f32
    %28 = vector.broadcast %cst_19 : f32 to vector<256x128xf32>
    %29 = arith.cmpf ogt, %27, %28 : vector<256x128xf32>
    %cst_20 = arith.constant 0.00999999977 : f32
    %30 = vector.broadcast %cst_20 : f32 to vector<256x128xf32>
    %31 = arith.mulf %30, %27 : vector<256x128xf32>
    %32 = arith.select %29, %27, %31 : vector<256x128xi1>, vector<256x128xf32>
    %33 = arith.truncf %32 : vector<256x128xf32> to vector<256x128xbf16>
    %c0_21 = arith.constant 0 : index
    %c0_22 = arith.constant 0 : index
    %34 = vector.load %arg8[%c0_21, %c0_22] : memref<128x128xbf16, #tpu.memory_space<vmem>>, vector<128x128xbf16>
    %cst_23 = arith.constant dense<0.000000e+00> : vector<256x128xf32>
    %35 = tpu.matmul %33, %34, %cst_23 {dimension_numbers = #tpu.dot_dimension_numbers<[1], [0], [0], [1], [0, 0, 1, 1], [], []>} : vector<256x128xbf16>, vector<128x128xbf16>, vector<256x128xf32> -> vector<256x128xf32>
    %c0_24 = arith.constant 0 : index
    %c0_25 = arith.constant 0 : index
    %36 = vector.load %arg9[%c0_24, %c0_25] : memref<1x128xf32, #tpu.memory_space<vmem>>, vector<1x128xf32>
    %37 = vector.broadcast %36 : vector<1x128xf32> to vector<256x128xf32>
    %38 = arith.addf %35, %37 : vector<256x128xf32>
    %39 = tpu.iota {dimensions = array<i32: 1>} : vector<256x128xi32>
    %c8_i32 = arith.constant 8 : i32
    %40 = vector.broadcast %c8_i32 : i32 to vector<256x128xi32>
    %41 = arith.cmpi slt, %39, %40 : vector<256x128xi32>
    %cst_26 = arith.constant 0xFF800000 : f32
    %42 = vector.broadcast %cst_26 : f32 to vector<256x128xf32>
    %43 = arith.select %41, %38, %42 : vector<256x128xi1>, vector<256x128xf32>
    %cst_27 = arith.constant dense<0xFF800000> : vector<256xf32>
    %44 = vector.multi_reduction <maximumf>, %43, %cst_27 [1] : vector<256x128xf32> to vector<256xf32>
    %45 = vector.shape_cast %44 : vector<256xf32> to vector<256x1xf32>
    %46 = vector.broadcast %45 : vector<256x1xf32> to vector<256x128xf32>
    %47 = arith.subf %43, %46 : vector<256x128xf32>
    %48 = math.exp %47 : vector<256x128xf32>
    %cst_28 = arith.constant dense<0.000000e+00> : vector<256xf32>
    %49 = vector.multi_reduction <add>, %48, %cst_28 [1] : vector<256x128xf32> to vector<256xf32>
    %50 = vector.shape_cast %49 : vector<256xf32> to vector<256x1xf32>
    %51 = tpu.reciprocal %50 {approx = true} : vector<256x1xf32> -> vector<256x1xf32>
    %52 = vector.broadcast %51 : vector<256x1xf32> to vector<256x128xf32>
    %53 = arith.mulf %48, %52 : vector<256x128xf32>
    %c0_29 = arith.constant 0 : index
    %c0_30 = arith.constant 0 : index
    %54 = vector.load %arg10[%c0_29, %c0_30] : memref<256x128xf32, #tpu.memory_space<vmem>>, vector<256x128xf32>
    tpu.vector_store %arg10[%c0_29, %c0_30], %53 {strides = array<i32>} : memref<256x128xf32, #tpu.memory_space<vmem>>, vector<256x128xf32>,
    return
  }
  func.func @transform_0(%arg0: i32) -> (i32, i32) {
    %c0_i32 = arith.constant 0 : i32
    %c0_i32_0 = arith.constant 0 : i32
    return %arg0, %c0_i32 : i32, i32
  }
  func.func @transform_1(%arg0: i32) -> (i32, i32) {
    %c0_i32 = arith.constant 0 : i32
    %c0_i32_0 = arith.constant 0 : i32
    %c0_i32_1 = arith.constant 0 : i32
    return %c0_i32, %c0_i32_0 : i32, i32
  }
  func.func @transform_2(%arg0: i32) -> (i32, i32) {
    %c0_i32 = arith.constant 0 : i32
    %c0_i32_0 = arith.constant 0 : i32
    %c0_i32_1 = arith.constant 0 : i32
    return %c0_i32, %c0_i32_0 : i32, i32
  }
  func.func @transform_3(%arg0: i32) -> (i32, i32) {
    %c0_i32 = arith.constant 0 : i32
    %c0_i32_0 = arith.constant 0 : i32
    %c0_i32_1 = arith.constant 0 : i32
    return %c0_i32, %c0_i32_0 : i32, i32
  }
  func.func @transform_4(%arg0: i32) -> (i32, i32) {
    %c0_i32 = arith.constant 0 : i32
    %c0_i32_0 = arith.constant 0 : i32
    %c0_i32_1 = arith.constant 0 : i32
    return %c0_i32, %c0_i32_0 : i32, i32
  }
  func.func @transform_5(%arg0: i32) -> (i32, i32) {
    %c0_i32 = arith.constant 0 : i32
    %c0_i32_0 = arith.constant 0 : i32
    %c0_i32_1 = arith.constant 0 : i32
    return %c0_i32, %c0_i32_0 : i32, i32
  }
  func.func @transform_6(%arg0: i32) -> (i32, i32) {
    %c0_i32 = arith.constant 0 : i32
    %c0_i32_0 = arith.constant 0 : i32
    %c0_i32_1 = arith.constant 0 : i32
    return %c0_i32, %c0_i32_0 : i32, i32
  }
  func.func @transform_7(%arg0: i32) -> (i32, i32) {
    %c0_i32 = arith.constant 0 : i32
    %c0_i32_0 = arith.constant 0 : i32
    %c0_i32_1 = arith.constant 0 : i32
    return %c0_i32, %c0_i32_0 : i32, i32
  }
  func.func @transform_8(%arg0: i32) -> (i32, i32) {
    %c0_i32 = arith.constant 0 : i32
    %c0_i32_0 = arith.constant 0 : i32
    %c0_i32_1 = arith.constant 0 : i32
    return %c0_i32, %c0_i32_0 : i32, i32
  }
  func.func @transform_9(%arg0: i32) -> (i32, i32) {
    %c0_i32 = arith.constant 0 : i32
    %c0_i32_0 = arith.constant 0 : i32
    return %arg0, %c0_i32 : i32, i32
  }
}

</mosaic_0001>

<llo_original>
// kernel: tpu_custom_call.1
$region0: #{tpu_custom_call.1}
  #allocation0 [shape = 'u32[]', space=smem, size = 0x4, offset = 0x4, fixed_abs, tag = 'smem constant byte address 0x4 - core index']
  #allocation1 [shape = 'u32[144,128]{1,0:T(1,128)}', space=vmem, size = 0x12000, scoped, tag = 'internal scratch']
  %s0 = inlined_call_operand.hbm [shape: bf16[512,128], index: 0, kind: input, shape index: {}]
  %s1 = inlined_call_operand.hbm [shape: bf16[128,128], index: 1, kind: input, shape index: {}]
  %s2 = inlined_call_operand.vmem [shape: f32[1,128], index: 2, kind: input, shape index: {}]
  %s3 = inlined_call_operand.hbm [shape: bf16[128,256], index: 3, kind: input, shape index: {}]
  %s4 = inlined_call_operand.vmem [shape: f32[1,256], index: 4, kind: input, shape index: {}]
  %s5 = inlined_call_operand.hbm [shape: bf16[256,128], index: 5, kind: input, shape index: {}]
  %s6 = inlined_call_operand.vmem [shape: f32[1,128], index: 6, kind: input, shape index: {}]
  %s7 = inlined_call_operand.hbm [shape: bf16[128,128], index: 7, kind: input, shape index: {}]
  %s8 = inlined_call_operand.vmem [shape: f32[1,128], index: 8, kind: input, shape index: {}]
  %s9 = inlined_call_operand.hbm [shape: f32[512,128], index: 9, kind: output, shape index: {}]
  %s10 = sld [smem:[#allocation0]]
  $region89: #{tpu_custom_call.1} parent=0
    _
  %s12 = ssub.s32 1, %s10
  %s13 = scalar_select 0, %s12, %s10
  $region1: #{tpu_custom_call.1} parent=0
    #allocation2 [shape = 'u8[131072]{0}', space=vmem, size = 0x20000, scoped, tag = 'input window, operand 0']
    #allocation3 [shape = 's32[2]{0}', space=sflag, size = 0x8, scoped, tag = 'scoped memory for tpu_custom_call.1']
    #allocation4 [shape = 's32[2]{0}', space=sflag, size = 0x8, scoped, tag = 'scoped memory for tpu_custom_call.1']
    #allocation5 [shape = 'u8[32768]{0}', space=vmem, size = 0x8000, scoped, tag = 'input window, operand 1, single buffered']
    #allocation6 [shape = 's32[1]{0}', space=sflag, size = 0x4, scoped, tag = 'scoped memory for tpu_custom_call.1']
    #allocation7 [shape = 'u8[65536]{0}', space=vmem, size = 0x10000, scoped, tag = 'input window, operand 3, single buffered']
    #allocation8 [shape = 'u8[65536]{0}', space=vmem, size = 0x10000, scoped, tag = 'input window, operand 5, single buffered']
    #allocation9 [shape = 's32[1]{0}', space=sflag, size = 0x4, scoped, tag = 'scoped memory for tpu_custom_call.1']
    #allocation10 [shape = 'u8[32768]{0}', space=vmem, size = 0x8000, scoped, tag = 'input window, operand 7, single buffered']
    #allocation11 [shape = 'u8[262144]{0}', space=vmem, size = 0x40000, scoped, tag = 'output window, operand 0']
    %14 = vsyncpa [#allocation3], 0
    %s15 = scalar_lea.sflag [#allocation3], 1
    %16 = vsyncpa %s15, 0
    %17 = vsyncpa [#allocation6], 0
    %18 = vsyncpa [#allocation9], 0
    %19 = vsyncpa [#allocation4], 0
    %s20 = scalar_lea.sflag [#allocation4], 1
    %21 = vsyncpa %s20, 0
    loop: start=0, step=1, limit=4
    $region2: #{tpu_custom_call.1} parent=1 // loop_pre_header
      _
    $region3: #{tpu_custom_call.1} parent=1 // loop_header
      %s23 = sphi 0, %s27
      %p24 = scmp.ge.s32.totalorder %s23, 4
      %s33 = sphi 0, %s35
      %s36 = sphi 0, %s33
      %s37 = sphi 0, %s36
      %s53 = sphi 0, %s37
      %s57 = sphi 0, %s57
      %s59 = sphi 0, %s57
      %s60 = sphi 0, %s59
      %s74 = sphi 0, %s60
      %s78 = sphi 0, %s78
      %s80 = sphi 0, %s78
      %s81 = sphi 0, %s80
      %s95 = sphi 0, %s81
      %s99 = sphi 0, %s99
      %s101 = sphi 0, %s99
      %s102 = sphi 0, %s101
      %s116 = sphi 0, %s102
      %s120 = sphi 0, %s120
      %s122 = sphi 0, %s120
      %s123 = sphi 0, %s122
      %s137 = sphi 0, %s123
      %s141 = sphi 0, %s141
      %s143 = sphi 0, %s141
      %s144 = sphi 0, %s143
      %s158 = sphi 0, %s144
      %s162 = sphi 0, %s162
      %s164 = sphi 0, %s162
      %s165 = sphi 0, %s164
      %s179 = sphi 0, %s165
      %s183 = sphi 0, %s183
      %s185 = sphi 0, %s183
      %s186 = sphi 0, %s185
      %s200 = sphi 0, %s186
      %s204 = sphi 0, %s204
      %s206 = sphi 0, %s204
      %s207 = sphi 0, %s206
      %s221 = sphi 0, %s207
      %s227 = sphi 0, %s229
      %s230 = sphi 0, %s227
      %s231 = sphi 0, %s230
      %s247 = sphi 0, %s231
    $region4: #{tpu_custom_call.1} parent=1 // loop_header_branch
      %26 = sbr.rel (%p24) target = $region8
    $region5: #{tpu_custom_call.1} parent=1 // loop_body
      %s28 = ssub.s32 %s23, 1
      %s29 = ssub.s32 %s23, 2
      %s30 = sadd.s32 %s23, 1
      %s31 = ssub.s32 %s23, %s30
      %p32 = scmp.eq.s32.totalorder %s31, 0
      %s34 = sadd.s32 %s33, 1
      %s35 = scalar_select %p32, %s33, %s34
      %p38 = pneg %p32
      %p39 = scmp.eq.s32.totalorder %s23, 1
      %p40 = por %p38, %p39
      %p41 = scmp.ne.s32.totalorder %s33, %s36
      %p42 = scmp.eq.s32.totalorder %s23, 0
      %p43 = por %p41, %p42
      %p44 = scmp.ne.s32.totalorder %s33, %s36
      %p45 = scmp.eq.s32.totalorder %s28, 1
      %p46 = por %p44, %p45
      %p47 = scmp.ne.s32.totalorder %s36, %s37
      %p48 = scmp.eq.s32.totalorder %s28, 0
      %p49 = por %p47, %p48
      %p50 = scmp.ne.s32.totalorder %s36, %s37
      %p51 = scmp.eq.s32.totalorder %s29, 1
      %p52 = por %p50, %p51
      %p54 = scmp.ne.s32.totalorder %s37, %s53
      %p55 = scmp.eq.s32.totalorder %s29, 0
      %p56 = por %p54, %p55
      %s58 = sadd.s32 %s57, 1
      %p61 = scmp.eq.s32.totalorder %s23, 1
      %p62 = scmp.ne.s32.totalorder %s57, %s59
      %p63 = scmp.eq.s32.totalorder %s23, 0
      %p64 = por %p62, %p63
      %p65 = scmp.ne.s32.totalorder %s57, %s59
      %p66 = scmp.eq.s32.totalorder %s28, 1
      %p67 = por %p65, %p66
      %p68 = scmp.ne.s32.totalorder %s59, %s60
      %p69 = scmp.eq.s32.totalorder %s28, 0
      %p70 = por %p68, %p69
      %p71 = scmp.ne.s32.totalorder %s59, %s60
      %p72 = scmp.eq.s32.totalorder %s29, 1
      %p73 = por %p71, %p72
      %p75 = scmp.ne.s32.totalorder %s60, %s74
      %p76 = scmp.eq.s32.totalorder %s29, 0
      %p77 = por %p75, %p76
      %s79 = sadd.s32 %s78, 1
      %p82 = scmp.eq.s32.totalorder %s23, 1
      %p83 = scmp.ne.s32.totalorder %s78, %s80
      %p84 = scmp.eq.s32.totalorder %s23, 0
      %p85 = por %p83, %p84
      %p86 = scmp.ne.s32.totalorder %s78, %s80
      %p87 = scmp.eq.s32.totalorder %s28, 1
      %p88 = por %p86, %p87
      %p89 = scmp.ne.s32.totalorder %s80, %s81
      %p90 = scmp.eq.s32.totalorder %s28, 0
      %p91 = por %p89, %p90
      %p92 = scmp.ne.s32.totalorder %s80, %s81
      %p93 = scmp.eq.s32.totalorder %s29, 1
      %p94 = por %p92, %p93
      %p96 = scmp.ne.s32.totalorder %s81, %s95
      %p97 = scmp.eq.s32.totalorder %s29, 0
      %p98 = por %p96, %p97
      %s100 = sadd.s32 %s99, 1
      %p103 = scmp.eq.s32.totalorder %s23, 1
      %p104 = scmp.ne.s32.totalorder %s99, %s101
      %p105 = scmp.eq.s32.totalorder %s23, 0
      %p106 = por %p104, %p105
      %p107 = scmp.ne.s32.totalorder %s99, %s101
      %p108 = scmp.eq.s32.totalorder %s28, 1
      %p109 = por %p107, %p108
      %p110 = scmp.ne.s32.totalorder %s101, %s102
      %p111 = scmp.eq.s32.totalorder %s28, 0
      %p112 = por %p110, %p111
      %p113 = scmp.ne.s32.totalorder %s101, %s102
      %p114 = scmp.eq.s32.totalorder %s29, 1
      %p115 = por %p113, %p114
      %p117 = scmp.ne.s32.totalorder %s102, %s116
      %p118 = scmp.eq.s32.totalorder %s29, 0
      %p119 = por %p117, %p118
      %s121 = sadd.s32 %s120, 1
      %p124 = scmp.eq.s32.totalorder %s23, 1
      %p125 = scmp.ne.s32.totalorder %s120, %s122
      %p126 = scmp.eq.s32.totalorder %s23, 0
      %p127 = por %p125, %p126
      %p128 = scmp.ne.s32.totalorder %s120, %s122
      %p129 = scmp.eq.s32.totalorder %s28, 1
      %p130 = por %p128, %p129
      %p131 = scmp.ne.s32.totalorder %s122, %s123
      %p132 = scmp.eq.s32.totalorder %s28, 0
      %p133 = por %p131, %p132
      %p134 = scmp.ne.s32.totalorder %s122, %s123
      %p135 = scmp.eq.s32.totalorder %s29, 1
      %p136 = por %p134, %p135
      %p138 = scmp.ne.s32.totalorder %s123, %s137
      %p139 = scmp.eq.s32.totalorder %s29, 0
      %p140 = por %p138, %p139
      %s142 = sadd.s32 %s141, 1
      %p145 = scmp.eq.s32.totalorder %s23, 1
      %p146 = scmp.ne.s32.totalorder %s141, %s143
      %p147 = scmp.eq.s32.totalorder %s23, 0
      %p148 = por %p146, %p147
      %p149 = scmp.ne.s32.totalorder %s141, %s143
      %p150 = scmp.eq.s32.totalorder %s28, 1
      %p151 = por %p149, %p150
      %p152 = scmp.ne.s32.totalorder %s143, %s144
      %p153 = scmp.eq.s32.totalorder %s28, 0
      %p154 = por %p152, %p153
      %p155 = scmp.ne.s32.totalorder %s143, %s144
      %p156 = scmp.eq.s32.totalorder %s29, 1
      %p157 = por %p155, %p156
      %p159 = scmp.ne.s32.totalorder %s144, %s158
      %p160 = scmp.eq.s32.totalorder %s29, 0
      %p161 = por %p159, %p160
      %s163 = sadd.s32 %s162, 1
      %p166 = scmp.eq.s32.totalorder %s23, 1
      %p167 = scmp.ne.s32.totalorder %s162, %s164
      %p168 = scmp.eq.s32.totalorder %s23, 0
      %p169 = por %p167, %p168
      %p170 = scmp.ne.s32.totalorder %s162, %s164
      %p171 = scmp.eq.s32.totalorder %s28, 1
      %p172 = por %p170, %p171
      %p173 = scmp.ne.s32.totalorder %s164, %s165
      %p174 = scmp.eq.s32.totalorder %s28, 0
      %p175 = por %p173, %p174
      %p176 = scmp.ne.s32.totalorder %s164, %s165
      %p177 = scmp.eq.s32.totalorder %s29, 1
      %p178 = por %p176, %p177
      %p180 = scmp.ne.s32.totalorder %s165, %s179
      %p181 = scmp.eq.s32.totalorder %s29, 0
      %p182 = por %p180, %p181
      %s184 = sadd.s32 %s183, 1
      %p187 = scmp.eq.s32.totalorder %s23, 1
      %p188 = scmp.ne.s32.totalorder %s183, %s185
      %p189 = scmp.eq.s32.totalorder %s23, 0
      %p190 = por %p188, %p189
      %p191 = scmp.ne.s32.totalorder %s183, %s185
      %p192 = scmp.eq.s32.totalorder %s28, 1
      %p193 = por %p191, %p192
      %p194 = scmp.ne.s32.totalorder %s185, %s186
      %p195 = scmp.eq.s32.totalorder %s28, 0
      %p196 = por %p194, %p195
      %p197 = scmp.ne.s32.totalorder %s185, %s186
      %p198 = scmp.eq.s32.totalorder %s29, 1
      %p199 = por %p197, %p198
      %p201 = scmp.ne.s32.totalorder %s186, %s200
      %p202 = scmp.eq.s32.totalorder %s29, 0
      %p203 = por %p201, %p202
      %s205 = sadd.s32 %s204, 1
      %p208 = scmp.eq.s32.totalorder %s23, 1
      %p209 = scmp.ne.s32.totalorder %s204, %s206
      %p210 = scmp.eq.s32.totalorder %s23, 0
      %p211 = por %p209, %p210
      %p212 = scmp.ne.s32.totalorder %s204, %s206
      %p213 = scmp.eq.s32.totalorder %s28, 1
      %p214 = por %p212, %p213
      %p215 = scmp.ne.s32.totalorder %s206, %s207
      %p216 = scmp.eq.s32.totalorder %s28, 0
      %p217 = por %p215, %p216
      %p218 = scmp.ne.s32.totalorder %s206, %s207
      %p219 = scmp.eq.s32.totalorder %s29, 1
      %p220 = por %p218, %p219
      %p222 = scmp.ne.s32.totalorder %s207, %s221
      %p223 = scmp.eq.s32.totalorder %s29, 0
      %p224 = por %p222, %p223
      %s225 = ssub.s32 %s23, %s30
      %p226 = scmp.eq.s32.totalorder %s225, 0
      %s228 = sadd.s32 %s227, 1
      %s229 = scalar_select %p226, %s227, %s228
      %p232 = pneg %p226
      %p233 = scmp.eq.s32.totalorder %s23, 1
      %p234 = por %p232, %p233
      %p235 = scmp.ne.s32.totalorder %s227, %s230
      %p236 = scmp.eq.s32.totalorder %s23, 0
      %p237 = por %p235, %p236
      %p238 = scmp.ne.s32.totalorder %s227, %s230
      %p239 = scmp.eq.s32.totalorder %s28, 1
      %p240 = por %p238, %p239
      %p241 = scmp.ne.s32.totalorder %s230, %s231
      %p242 = scmp.eq.s32.totalorder %s28, 0
      %p243 = por %p241, %p242
      %p244 = scmp.ne.s32.totalorder %s230, %s231
      %p245 = scmp.eq.s32.totalorder %s29, 1
      %p246 = por %p244, %p245
      %p248 = scmp.ne.s32.totalorder %s231, %s247
      %p249 = scmp.eq.s32.totalorder %s29, 0
      %p250 = por %p248, %p249
      %p251 = scmp.le.s32.totalorder 1, %s23
      %p252 = scmp.lt.s32.totalorder %s23, 3
      %p253 = pnand %p251, %p252
      %p254 = pneg %p253
      // Predicated region
      $region9: #{tpu_custom_call.1} parent=5 // pred_check
        _
      $region10: #{tpu_custom_call.1} parent=5 // pred_check_branch
        %256 = sbr.rel (%p253) target = $region12
      $region11: #{tpu_custom_call.1} parent=5 // pred_region
        %s257 = ssub.s32 %s23, 1
        // Predicated region
        $region13: #{tpu_custom_call.1} parent=11 // pred_check
          %p258 = pneg %p70
        $region14: #{tpu_custom_call.1} parent=11 // pred_check_branch
          %260 = sbr.rel (%p258) target = $region16
        $region15: #{tpu_custom_call.1} parent=11 // pred_region
          %s262 = ssub.s32 1024, 1024
          %263 = vsyncadd [#allocation6], %s262
          %s264 = sshll.u32 [#allocation5], 4
          %s265 = int_to_ptr.vmem [resolvable:$true] %s264
          %270 = dma.hbm_to_vmem [thread:$0]  %s1, 1024, %s265, [#allocation6], 64, 64, 4
        $region16: #{tpu_custom_call.1} parent=11 // pred_fallthru
          _
        // Predicated region
        $region17: #{tpu_custom_call.1} parent=11 // pred_check
          %p271 = pneg %p91
        $region18: #{tpu_custom_call.1} parent=11 // pred_check_branch
          %273 = sbr.rel (%p271) target = $region20
        $region19: #{tpu_custom_call.1} parent=11 // pred_region
          _
        $region20: #{tpu_custom_call.1} parent=11 // pred_fallthru
          _
        // Predicated region
        $region21: #{tpu_custom_call.1} parent=11 // pred_check
          %p274 = pneg %p112
        $region22: #{tpu_custom_call.1} parent=11 // pred_check_branch
          %276 = sbr.rel (%p274) target = $region24
        $region23: #{tpu_custom_call.1} parent=11 // pred_region
          %s278 = ssub.s32 2048, 2048
          %279 = vsyncadd [#allocation6], %s278
          %s280 = sshll.u32 [#allocation7], 4
          %s281 = int_to_ptr.vmem [resolvable:$true] %s280
          %286 = dma.hbm_to_vmem [thread:$0]  %s3, 2048, %s281, [#allocation6], 128, 128, 8
        $region24: #{tpu_custom_call.1} parent=11 // pred_fallthru
          _
        // Predicated region
        $region25: #{tpu_custom_call.1} parent=11 // pred_check
          %p287 = pneg %p133
        $region26: #{tpu_custom_call.1} parent=11 // pred_check_branch
          %289 = sbr.rel (%p287) target = $region28
        $region27: #{tpu_custom_call.1} parent=11 // pred_region
          _
        $region28: #{tpu_custom_call.1} parent=11 // pred_fallthru
          _
        // Predicated region
        $region29: #{tpu_custom_call.1} parent=11 // pred_check
          %p290 = pneg %p154
        $region30: #{tpu_custom_call.1} parent=11 // pred_check_branch
          %292 = sbr.rel (%p290) target = $region32
        $region31: #{tpu_custom_call.1} parent=11 // pred_region
          %s294 = ssub.s32 2048, 2048
          %295 = vsyncadd [#allocation9], %s294
          %s296 = sshll.u32 [#allocation8], 4
          %s297 = int_to_ptr.vmem [resolvable:$true] %s296
          %302 = dma.hbm_to_vmem [thread:$0]  %s5, 2048, %s297, [#allocation9], 64, 64, 4
        $region32: #{tpu_custom_call.1} parent=11 // pred_fallthru
          _
        // Predicated region
        $region33: #{tpu_custom_call.1} parent=11 // pred_check
          %p303 = pneg %p175
        $region34: #{tpu_custom_call.1} parent=11 // pred_check_branch
          %305 = sbr.rel (%p303) target = $region36
        $region35: #{tpu_custom_call.1} parent=11 // pred_region
          _
        $region36: #{tpu_custom_call.1} parent=11 // pred_fallthru
          _
        // Predicated region
        $region37: #{tpu_custom_call.1} parent=11 // pred_check
          %p306 = pneg %p196
        $region38: #{tpu_custom_call.1} parent=11 // pred_check_branch
          %308 = sbr.rel (%p306) target = $region40
        $region39: #{tpu_custom_call.1} parent=11 // pred_region
          %s310 = ssub.s32 1024, 1024
          %311 = vsyncadd [#allocation9], %s310
          %s312 = sshll.u32 [#allocation10], 4
          %s313 = int_to_ptr.vmem [resolvable:$true] %s312
          %318 = dma.hbm_to_vmem [thread:$0]  %s7, 1024, %s313, [#allocation9], 64, 64, 4
        $region40: #{tpu_custom_call.1} parent=11 // pred_fallthru
          _
        // Predicated region
        $region41: #{tpu_custom_call.1} parent=11 // pred_check
          %p319 = pneg %p217
        $region42: #{tpu_custom_call.1} parent=11 // pred_check_branch
          %321 = sbr.rel (%p319) target = $region44
        $region43: #{tpu_custom_call.1} parent=11 // pred_region
          _
        $region44: #{tpu_custom_call.1} parent=11 // pred_fallthru
          _
      $region12: #{tpu_custom_call.1} parent=5 // pred_fallthru
        _
      %p322 = scmp.lt.s32.totalorder %s23, 2
      // Predicated region
      $region45: #{tpu_custom_call.1} parent=5 // pred_check
        %p323 = pneg %p322
      $region46: #{tpu_custom_call.1} parent=5 // pred_check_branch
        %325 = sbr.rel (%p323) target = $region48
      $region47: #{tpu_custom_call.1} parent=5 // pred_region
        // Predicated region
        $region49: #{tpu_custom_call.1} parent=47 // pred_check
          %p326 = pneg %p43
        $region50: #{tpu_custom_call.1} parent=47 // pred_check_branch
          %328 = sbr.rel (%p326) target = $region52
        $region51: #{tpu_custom_call.1} parent=47 // pred_region
          %s329 = sand.u32 %s33, 1
          %s330 = scalar_lea.sflag [#allocation3], %s329
          %s331 = sand.u32 %s33, 1
          %s332 = smul.addr %s331, 128
          %s333 = scalar_lea.vmem [#allocation2], %s332
          %s334 = smul.u32 32, %s23
          %s336 = ssub.s32 2048, 2048
          %337 = vsyncadd %s330, %s336
          %s338 = smul.addr %s334, 64
          %s339 = scalar_lea.hbm %s0, %s338
          %s340 = sshll.u32 %s333, 4
          %s341 = int_to_ptr.vmem [resolvable:$true] %s340
          %346 = dma.hbm_to_vmem [thread:$0]  %s339, 2048, %s341, %s330, 64, 64, 4
        $region52: #{tpu_custom_call.1} parent=47 // pred_fallthru
          _
      $region48: #{tpu_custom_call.1} parent=5 // pred_fallthru
        _
      %p347 = scmp.le.s32.totalorder 1, %s23
      %p348 = scmp.lt.s32.totalorder %s23, 3
      %p349 = pnand %p347, %p348
      %p350 = pneg %p349
      // Predicated region
      $region53: #{tpu_custom_call.1} parent=5 // pred_check
        _
      $region54: #{tpu_custom_call.1} parent=5 // pred_check_branch
        %352 = sbr.rel (%p349) target = $region56
      $region55: #{tpu_custom_call.1} parent=5 // pred_region
        %s353 = ssub.s32 %s23, 1
        %s354 = sand.u32 %s36, 1
        %s355 = scalar_lea.sflag [#allocation3], %s354
        %s356 = sand.u32 %s36, 1
        %s357 = smul.addr %s356, 128
        %s358 = scalar_lea.vmem [#allocation2], %s357
        // Predicated region
        $region57: #{tpu_custom_call.1} parent=55 // pred_check
          %p359 = pneg %p49
        $region58: #{tpu_custom_call.1} parent=55 // pred_check_branch
          %361 = sbr.rel (%p359) target = $region60
        $region59: #{tpu_custom_call.1} parent=55 // pred_region
          %362 = dma.done %s355, 2048
        $region60: #{tpu_custom_call.1} parent=55 // pred_fallthru
          _
        // Predicated region
        $region61: #{tpu_custom_call.1} parent=55 // pred_check
          %p363 = pneg %p70
        $region62: #{tpu_custom_call.1} parent=55 // pred_check_branch
          %365 = sbr.rel (%p363) target = $region64
        $region63: #{tpu_custom_call.1} parent=55 // pred_region
          %366 = dma.done [#allocation6], 1024
        $region64: #{tpu_custom_call.1} parent=55 // pred_fallthru
          _
        // Predicated region
        $region65: #{tpu_custom_call.1} parent=55 // pred_check
          %p367 = pneg %p112
        $region66: #{tpu_custom_call.1} parent=55 // pred_check_branch
          %369 = sbr.rel (%p367) target = $region68
        $region67: #{tpu_custom_call.1} parent=55 // pred_region
          %370 = dma.done [#allocation6], 2048
        $region68: #{tpu_custom_call.1} parent=55 // pred_fallthru
          _
        // Predicated region
        $region69: #{tpu_custom_call.1} parent=55 // pred_check
          %p371 = pneg %p154
        $region70: #{tpu_custom_call.1} parent=55 // pred_check_branch
          %373 = sbr.rel (%p371) target = $region72
        $region71: #{tpu_custom_call.1} parent=55 // pred_region
          %374 = dma.done [#allocation9], 2048
        $region72: #{tpu_custom_call.1} parent=55 // pred_fallthru
          _
        // Predicated region
        $region73: #{tpu_custom_call.1} parent=55 // pred_check
          %p375 = pneg %p196
        $region74: #{tpu_custom_call.1} parent=55 // pred_check_branch
          %377 = sbr.rel (%p375) target = $region76
        $region75: #{tpu_custom_call.1} parent=55 // pred_region
          %378 = dma.done [#allocation9], 1024
        $region76: #{tpu_custom_call.1} parent=55 // pred_fallthru
          _
        %s379 = sand.u32 %s36, 1
        %s380 = scalar_lea.sflag [#allocation3], %s379
        %s381 = sand.u32 %s36, 1
        %s382 = smul.addr %s381, 128
        %s383 = scalar_lea.vmem [#allocation2], %s382
        %p384 = pneg %p49
        %p385 = pneg %p46
        %p386 = pneg %p70
        %p387 = pneg %p67
        %p388 = pneg %p91
        %p389 = pneg %p88
        %p390 = pneg %p112
        %p391 = pneg %p109
        %p392 = pneg %p133
        %p393 = pneg %p130
        %p394 = pneg %p154
        %p395 = pneg %p151
        %p396 = pneg %p175
        %p397 = pneg %p172
        %p398 = pneg %p196
        %p399 = pneg %p193
        %p400 = pneg %p217
        %p401 = pneg %p214
        %p402 = pneg %p243
        %p403 = pneg %p240
        %s404 = sand.u32 %s230, 1
        %s405 = scalar_lea.sflag [#allocation4], %s404
        %s406 = sand.u32 %s230, 1
        %s407 = smul.addr %s406, 256
        %s408 = scalar_lea.vmem [#allocation11], %s407
        %s409 = smul.u32 32, %s28
        %s410 = smul.u32 32, %s28
        %v412 = vld [vmem:[%s358] sm:$0xf]
        %v413 = vld [vmem:[%s358 + $0x4] sm:$0xf]
        %v414 = vld [vmem:[%s358 + $0x8] sm:$0xf]
        %v415 = vld [vmem:[%s358 + $0xc] sm:$0xf]
        %v416 = vld [vmem:[%s358 + $0x10] sm:$0xf]
        %v417 = vld [vmem:[%s358 + $0x14] sm:$0xf]
        %v418 = vld [vmem:[%s358 + $0x18] sm:$0xf]
        %v419 = vld [vmem:[%s358 + $0x1c] sm:$0xf]
        %v420 = vld [vmem:[%s358 + $0x20] sm:$0xf]
        %v421 = vld [vmem:[%s358 + $0x24] sm:$0xf]
        %v422 = vld [vmem:[%s358 + $0x28] sm:$0xf]
        %v423 = vld [vmem:[%s358 + $0x2c] sm:$0xf]
        %v424 = vld [vmem:[%s358 + $0x30] sm:$0xf]
        %v425 = vld [vmem:[%s358 + $0x34] sm:$0xf]
        %v426 = vld [vmem:[%s358 + $0x38] sm:$0xf]
        %v427 = vld [vmem:[%s358 + $0x3c] sm:$0xf]
        %v428 = vld [vmem:[%s358 + $0x40] sm:$0xf]
        %v429 = vld [vmem:[%s358 + $0x44] sm:$0xf]
        %v430 = vld [vmem:[%s358 + $0x48] sm:$0xf]
        %v431 = vld [vmem:[%s358 + $0x4c] sm:$0xf]
        %v432 = vld [vmem:[%s358 + $0x50] sm:$0xf]
        %v433 = vld [vmem:[%s358 + $0x54] sm:$0xf]
        %v434 = vld [vmem:[%s358 + $0x58] sm:$0xf]
        %v435 = vld [vmem:[%s358 + $0x5c] sm:$0xf]
        %v436 = vld [vmem:[%s358 + $0x60] sm:$0xf]
        %v437 = vld [vmem:[%s358 + $0x64] sm:$0xf]
        %v438 = vld [vmem:[%s358 + $0x68] sm:$0xf]
        %v439 = vld [vmem:[%s358 + $0x6c] sm:$0xf]
        %v440 = vld [vmem:[%s358 + $0x70] sm:$0xf]
        %v441 = vld [vmem:[%s358 + $0x74] sm:$0xf]
        %v442 = vld [vmem:[%s358 + $0x78] sm:$0xf]
        %v443 = vld [vmem:[%s358 + $0x7c] sm:$0xf]
        %v444 = vld [vmem:[#allocation5] sm:$0xf]
        %v445 = vld [vmem:[#allocation5 + $0x4] sm:$0xf]
        %v446 = vld [vmem:[#allocation5 + $0x8] sm:$0xf]
        %v447 = vld [vmem:[#allocation5 + $0xc] sm:$0xf]
        %v448 = vld [vmem:[#allocation5 + $0x10] sm:$0xf]
        %v449 = vld [vmem:[#allocation5 + $0x14] sm:$0xf]
        %v450 = vld [vmem:[#allocation5 + $0x18] sm:$0xf]
        %v451 = vld [vmem:[#allocation5 + $0x1c] sm:$0xf]
        %v452 = vld [vmem:[#allocation5 + $0x20] sm:$0xf]
        %v453 = vld [vmem:[#allocation5 + $0x24] sm:$0xf]
        %v454 = vld [vmem:[#allocation5 + $0x28] sm:$0xf]
        %v455 = vld [vmem:[#allocation5 + $0x2c] sm:$0xf]
        %v456 = vld [vmem:[#allocation5 + $0x30] sm:$0xf]
        %v457 = vld [vmem:[#allocation5 + $0x34] sm:$0xf]
        %v458 = vld [vmem:[#allocation5 + $0x38] sm:$0xf]
        %v459 = vld [vmem:[#allocation5 + $0x3c] sm:$0xf]
        %v460 = vld [vmem:[%s2] sm:$0x1]
        %v462 = vlaneseq
        %v463 = vshrl.u32 %v462, 7
        %v464 = vsub.s32 0, %v463
        %v465 = vrot.slane %v460, %v464
        %v499 = vunpack.c.l.b16 %v412
        %v500 = vunpack.c.l.b16 %v413
        %v501 = vunpack.c.l.b16 %v414
        %v502 = vunpack.c.l.b16 %v415
        %v503 = vunpack.c.l.b16 %v416
        %v504 = vunpack.c.l.b16 %v417
        %v505 = vunpack.c.l.b16 %v418
        %v506 = vunpack.c.l.b16 %v419
        %v507 = vunpack.c.l.b16 %v420
        %v508 = vunpack.c.l.b16 %v421
        %v509 = vunpack.c.l.b16 %v422
        %v510 = vunpack.c.l.b16 %v423
        %v511 = vunpack.c.l.b16 %v424
        %v512 = vunpack.c.l.b16 %v425
        %v513 = vunpack.c.l.b16 %v426
        %v514 = vunpack.c.l.b16 %v427
        %v515 = vunpack.c.l.b16 %v428
        %v516 = vunpack.c.l.b16 %v429
        %v517 = vunpack.c.l.b16 %v430
        %v518 = vunpack.c.l.b16 %v431
        %v519 = vunpack.c.l.b16 %v432
        %v520 = vunpack.c.l.b16 %v433
        %v521 = vunpack.c.l.b16 %v434
        %v522 = vunpack.c.l.b16 %v435
        %v523 = vunpack.c.l.b16 %v436
        %v524 = vunpack.c.l.b16 %v437
        %v525 = vunpack.c.l.b16 %v438
        %v526 = vunpack.c.l.b16 %v439
        %v527 = vunpack.c.l.b16 %v440
        %v528 = vunpack.c.l.b16 %v441
        %v529 = vunpack.c.l.b16 %v442
        %v530 = vunpack.c.l.b16 %v443
        %v531 = vpack.c.b16 %v500, %v499
        %v532 = vpack.c.b16 %v502, %v501
        %v533 = vpack.c.b16 %v504, %v503
        %v534 = vpack.c.b16 %v506, %v505
        %v535 = vpack.c.b16 %v508, %v507
        %v536 = vpack.c.b16 %v510, %v509
        %v537 = vpack.c.b16 %v512, %v511
        %v538 = vpack.c.b16 %v514, %v513
        %v539 = vpack.c.b16 %v516, %v515
        %v540 = vpack.c.b16 %v518, %v517
        %v541 = vpack.c.b16 %v520, %v519
        %v542 = vpack.c.b16 %v522, %v521
        %v543 = vpack.c.b16 %v524, %v523
        %v544 = vpack.c.b16 %v526, %v525
        %v545 = vpack.c.b16 %v528, %v527
        %v546 = vpack.c.b16 %v530, %v529
        %v579 = vunpack.c.l.b16 %v444
        %v580 = vunpack.c.l.b16 %v445
        %v581 = vunpack.c.l.b16 %v446
        %v582 = vunpack.c.l.b16 %v447
        %v583 = vunpack.c.l.b16 %v448
        %v584 = vunpack.c.l.b16 %v449
        %v585 = vunpack.c.l.b16 %v450
        %v586 = vunpack.c.l.b16 %v451
        %v587 = vunpack.c.l.b16 %v452
        %v588 = vunpack.c.l.b16 %v453
        %v589 = vunpack.c.l.b16 %v454
        %v590 = vunpack.c.l.b16 %v455
        %v591 = vunpack.c.l.b16 %v456
        %v592 = vunpack.c.l.b16 %v457
        %v593 = vunpack.c.l.b16 %v458
        %v594 = vunpack.c.l.b16 %v459
        %v595 = vpack.c.b16 %v580, %v579
        %v596 = vpack.c.b16 %v582, %v581
        %v597 = vpack.c.b16 %v584, %v583
        %v598 = vpack.c.b16 %v586, %v585
        %v599 = vpack.c.b16 %v588, %v587
        %v600 = vpack.c.b16 %v590, %v589
        %v601 = vpack.c.b16 %v592, %v591
        %v602 = vpack.c.b16 %v594, %v593
        %611 = vmatprep.subr.bf16.mxu0 0
        %612 = vmatpush1.bf16.msra.mxu0 %v602
        %613 = vmatprep.subr.bf16.mxu0 0
        %614 = vmatpush1.bf16.msra.mxu0 %v601
        %615 = vmatprep.subr.bf16.mxu0 0
        %616 = vmatpush1.bf16.msra.mxu0 %v600
        %617 = vmatprep.subr.bf16.mxu0 0
        %618 = vmatpush1.bf16.msra.mxu0 %v599
        %619 = vmatprep.subr.bf16.mxu0 0
        %620 = vmatpush1.bf16.msra.mxu0 %v598
        %621 = vmatprep.subr.bf16.mxu0 0
        %622 = vmatpush1.bf16.msra.mxu0 %v597
        %623 = vmatprep.subr.bf16.mxu0 0
        %624 = vmatpush1.bf16.msra.mxu0 %v596
        %625 = vmatprep.subr.bf16.mxu0 0
        %626 = vmatpush1.bf16.msra.mxu0 %v595
        %627 = vmatprep.subr.bf16.mxu0 0
        %628 = vmatpush2.bf16.msra.mxu0 0
        %629 = vmatprep.subr.bf16.mxu0 0
        %630 = vmatpush2.bf16.msra.mxu0 0
        %631 = vmatprep.subr.bf16.mxu0 0
        %632 = vmatpush2.bf16.msra.mxu0 0
        %633 = vmatprep.subr.bf16.mxu0 0
        %634 = vmatpush2.bf16.msra.mxu0 0
        %635 = vmatprep.subr.bf16.mxu0 0
        %636 = vmatpush2.bf16.msra.mxu0 0
        %637 = vmatprep.subr.bf16.mxu0 0
        %638 = vmatpush2.bf16.msra.mxu0 0
        %639 = vmatprep.subr.bf16.mxu0 0
        %640 = vmatpush2.bf16.msra.mxu0 0
        %641 = vmatprep.subr.bf16.mxu0 0
        %642 = vmatpush2.bf16.msra.mxu0 0
        %643 = vmatprep.mubr.bf16.mxu0 0
        %644 = vmatmul.mubr.bf16.gmra.mxu0 %v531
        %v645 = vpop.f32.mrf.mxu0
        %v646 = vadd.f32 %v465, %v645
        %v647 = vpop.f32.mrf.mxu0
        %v648 = vpop.f32.mrf.mxu0
        %v649 = vadd.f32 %v465, %v648
        %v650 = vpop.f32.mrf.mxu0
        %651 = vmatprep.mubr.bf16.mxu0 0
        %652 = vmatmul.mubr.bf16.gmra.mxu0 %v532
        %v653 = vpop.f32.mrf.mxu0
        %v654 = vadd.f32 %v465, %v653
        %v655 = vpop.f32.mrf.mxu0
        %v656 = vpop.f32.mrf.mxu0
        %v657 = vadd.f32 %v465, %v656
        %v658 = vpop.f32.mrf.mxu0
        %659 = vmatprep.mubr.bf16.mxu0 0
        %660 = vmatmul.mubr.bf16.gmra.mxu0 %v533
        %v661 = vpop.f32.mrf.mxu0
        %v662 = vadd.f32 %v465, %v661
        %v663 = vpop.f32.mrf.mxu0
        %v664 = vpop.f32.mrf.mxu0
        %v665 = vadd.f32 %v465, %v664
        %v666 = vpop.f32.mrf.mxu0
        %667 = vmatprep.mubr.bf16.mxu0 0
        %668 = vmatmul.mubr.bf16.gmra.mxu0 %v534
        %v669 = vpop.f32.mrf.mxu0
        %v670 = vadd.f32 %v465, %v669
        %v671 = vpop.f32.mrf.mxu0
        %v672 = vpop.f32.mrf.mxu0
        %v673 = vadd.f32 %v465, %v672
        %v674 = vpop.f32.mrf.mxu0
        %675 = vmatprep.mubr.bf16.mxu0 0
        %676 = vmatmul.mubr.bf16.gmra.mxu0 %v535
        %v677 = vpop.f32.mrf.mxu0
        %v678 = vadd.f32 %v465, %v677
        %v679 = vpop.f32.mrf.mxu0
        %v680 = vpop.f32.mrf.mxu0
        %v681 = vadd.f32 %v465, %v680
        %v682 = vpop.f32.mrf.mxu0
        %683 = vmatprep.mubr.bf16.mxu0 0
        %684 = vmatmul.mubr.bf16.gmra.mxu0 %v536
        %v685 = vpop.f32.mrf.mxu0
        %v686 = vadd.f32 %v465, %v685
        %v687 = vpop.f32.mrf.mxu0
        %v688 = vpop.f32.mrf.mxu0
        %v689 = vadd.f32 %v465, %v688
        %v690 = vpop.f32.mrf.mxu0
        %691 = vmatprep.mubr.bf16.mxu0 0
        %692 = vmatmul.mubr.bf16.gmra.mxu0 %v537
        %v693 = vpop.f32.mrf.mxu0
        %v694 = vadd.f32 %v465, %v693
        %v695 = vpop.f32.mrf.mxu0
        %v696 = vpop.f32.mrf.mxu0
        %v697 = vadd.f32 %v465, %v696
        %v698 = vpop.f32.mrf.mxu0
        %699 = vmatprep.mubr.bf16.mxu0 0
        %700 = vmatmul.mubr.bf16.gmra.mxu0 %v538
        %v701 = vpop.f32.mrf.mxu0
        %v702 = vadd.f32 %v465, %v701
        %v703 = vpop.f32.mrf.mxu0
        %v704 = vpop.f32.mrf.mxu0
        %v705 = vadd.f32 %v465, %v704
        %v706 = vpop.f32.mrf.mxu0
        %707 = vmatprep.mubr.bf16.mxu0 0
        %708 = vmatmul.mubr.bf16.gmra.mxu0 %v539
        %v709 = vpop.f32.mrf.mxu0
        %v710 = vadd.f32 %v465, %v709
        %v711 = vpop.f32.mrf.mxu0
        %v712 = vpop.f32.mrf.mxu0
        %v713 = vadd.f32 %v465, %v712
        %v714 = vpop.f32.mrf.mxu0
        %715 = vmatprep.mubr.bf16.mxu0 0
        %716 = vmatmul.mubr.bf16.gmra.mxu0 %v540
        %v717 = vpop.f32.mrf.mxu0
        %v718 = vadd.f32 %v465, %v717
        %v719 = vpop.f32.mrf.mxu0
        %v720 = vpop.f32.mrf.mxu0
        %v721 = vadd.f32 %v465, %v720
        %v722 = vpop.f32.mrf.mxu0
        %723 = vmatprep.mubr.bf16.mxu0 0
        %724 = vmatmul.mubr.bf16.gmra.mxu0 %v541
        %v725 = vpop.f32.mrf.mxu0
        %v726 = vadd.f32 %v465, %v725
        %v727 = vpop.f32.mrf.mxu0
        %v728 = vpop.f32.mrf.mxu0
        %v729 = vadd.f32 %v465, %v728
        %v730 = vpop.f32.mrf.mxu0
        %731 = vmatprep.mubr.bf16.mxu0 0
        %732 = vmatmul.mubr.bf16.gmra.mxu0 %v542
        %v733 = vpop.f32.mrf.mxu0
        %v734 = vadd.f32 %v465, %v733
        %v735 = vpop.f32.mrf.mxu0
        %v736 = vpop.f32.mrf.mxu0
        %v737 = vadd.f32 %v465, %v736
        %v738 = vpop.f32.mrf.mxu0
        %739 = vmatprep.mubr.bf16.mxu0 0
        %740 = vmatmul.mubr.bf16.gmra.mxu0 %v543
        %v741 = vpop.f32.mrf.mxu0
        %v742 = vadd.f32 %v465, %v741
        %v743 = vpop.f32.mrf.mxu0
        %v744 = vpop.f32.mrf.mxu0
        %v745 = vadd.f32 %v465, %v744
        %v746 = vpop.f32.mrf.mxu0
        %747 = vmatprep.mubr.bf16.mxu0 0
        %748 = vmatmul.mubr.bf16.gmra.mxu0 %v544
        %v749 = vpop.f32.mrf.mxu0
        %v750 = vadd.f32 %v465, %v749
        %v751 = vpop.f32.mrf.mxu0
        %v752 = vpop.f32.mrf.mxu0
        %v753 = vadd.f32 %v465, %v752
        %v754 = vpop.f32.mrf.mxu0
        %755 = vmatprep.mubr.bf16.mxu0 0
        %756 = vmatmul.mubr.bf16.gmra.mxu0 %v545
        %v757 = vpop.f32.mrf.mxu0
        %v758 = vadd.f32 %v465, %v757
        %v759 = vpop.f32.mrf.mxu0
        %v760 = vpop.f32.mrf.mxu0
        %v761 = vadd.f32 %v465, %v760
        %v762 = vpop.f32.mrf.mxu0
        %763 = vmatprep.mubr.bf16.mxu0 0
        %764 = vmatmul.mubr.bf16.gmra.mxu0 %v546
        %v765 = vpop.f32.mrf.mxu0
        %v766 = vadd.f32 %v465, %v765
        %v767 = vpop.f32.mrf.mxu0
        %v768 = vpop.f32.mrf.mxu0
        %v769 = vadd.f32 %v465, %v768
        %v770 = vpop.f32.mrf.mxu0
        %771 = vdwg.mxu0
        %vm772 = vcmp.gt.f32.partialorder %v646, 0.0
        %vm773 = vcmp.gt.f32.partialorder %v649, 0.0
        %vm774 = vcmp.gt.f32.partialorder %v654, 0.0
        %vm775 = vcmp.gt.f32.partialorder %v657, 0.0
        %vm776 = vcmp.gt.f32.partialorder %v662, 0.0
        %vm777 = vcmp.gt.f32.partialorder %v665, 0.0
        %vm778 = vcmp.gt.f32.partialorder %v670, 0.0
        %vm779 = vcmp.gt.f32.partialorder %v673, 0.0
        %vm780 = vcmp.gt.f32.partialorder %v678, 0.0
        %vm781 = vcmp.gt.f32.partialorder %v681, 0.0
        %vm782 = vcmp.gt.f32.partialorder %v686, 0.0
        %vm783 = vcmp.gt.f32.partialorder %v689, 0.0
        %vm784 = vcmp.gt.f32.partialorder %v694, 0.0
        %vm785 = vcmp.gt.f32.partialorder %v697, 0.0
        %vm786 = vcmp.gt.f32.partialorder %v702, 0.0
        %vm787 = vcmp.gt.f32.partialorder %v705, 0.0
        %vm788 = vcmp.gt.f32.partialorder %v710, 0.0
        %vm789 = vcmp.gt.f32.partialorder %v713, 0.0
        %vm790 = vcmp.gt.f32.partialorder %v718, 0.0
        %vm791 = vcmp.gt.f32.partialorder %v721, 0.0
        %vm792 = vcmp.gt.f32.partialorder %v726, 0.0
        %vm793 = vcmp.gt.f32.partialorder %v729, 0.0
        %vm794 = vcmp.gt.f32.partialorder %v734, 0.0
        %vm795 = vcmp.gt.f32.partialorder %v737, 0.0
        %vm796 = vcmp.gt.f32.partialorder %v742, 0.0
        %vm797 = vcmp.gt.f32.partialorder %v745, 0.0
        %vm798 = vcmp.gt.f32.partialorder %v750, 0.0
        %vm799 = vcmp.gt.f32.partialorder %v753, 0.0
        %vm800 = vcmp.gt.f32.partialorder %v758, 0.0
        %vm801 = vcmp.gt.f32.partialorder %v761, 0.0
        %vm802 = vcmp.gt.f32.partialorder %v766, 0.0
        %vm803 = vcmp.gt.f32.partialorder %v769, 0.0
        %v804 = vmul.f32 %v646, 0.01
        %v805 = vmul.f32 %v649, 0.01
        %v806 = vmul.f32 %v654, 0.01
        %v807 = vmul.f32 %v657, 0.01
        %v808 = vmul.f32 %v662, 0.01
        %v809 = vmul.f32 %v665, 0.01
        %v810 = vmul.f32 %v670, 0.01
        %v811 = vmul.f32 %v673, 0.01
        %v812 = vmul.f32 %v678, 0.01
        %v813 = vmul.f32 %v681, 0.01
        %v814 = vmul.f32 %v686, 0.01
        %v815 = vmul.f32 %v689, 0.01
        %v816 = vmul.f32 %v694, 0.01
        %v817 = vmul.f32 %v697, 0.01
        %v818 = vmul.f32 %v702, 0.01
        %v819 = vmul.f32 %v705, 0.01
        %v820 = vmul.f32 %v710, 0.01
        %v821 = vmul.f32 %v713, 0.01
        %v822 = vmul.f32 %v718, 0.01
        %v823 = vmul.f32 %v721, 0.01
        %v824 = vmul.f32 %v726, 0.01
        %v825 = vmul.f32 %v729, 0.01
        %v826 = vmul.f32 %v734, 0.01
        %v827 = vmul.f32 %v737, 0.01
        %v828 = vmul.f32 %v742, 0.01
        %v829 = vmul.f32 %v745, 0.01
        %v830 = vmul.f32 %v750, 0.01
        %v831 = vmul.f32 %v753, 0.01
        %v832 = vmul.f32 %v758, 0.01
        %v833 = vmul.f32 %v761, 0.01
        %v834 = vmul.f32 %v766, 0.01
        %v835 = vmul.f32 %v769, 0.01
        %v836 = vsel %vm772, %v646, %v804
        %v837 = vsel %vm773, %v649, %v805
        %v838 = vsel %vm774, %v654, %v806
        %v839 = vsel %vm775, %v657, %v807
        %v840 = vsel %vm776, %v662, %v808
        %v841 = vsel %vm777, %v665, %v809
        %v842 = vsel %vm778, %v670, %v810
        %v843 = vsel %vm779, %v673, %v811
        %v844 = vsel %vm780, %v678, %v812
        %v845 = vsel %vm781, %v681, %v813
        %v846 = vsel %vm782, %v686, %v814
        %v847 = vsel %vm783, %v689, %v815
        %v848 = vsel %vm784, %v694, %v816
        %v849 = vsel %vm785, %v697, %v817
        %v850 = vsel %vm786, %v702, %v818
        %v851 = vsel %vm787, %v705, %v819
        %v852 = vsel %vm788, %v710, %v820
        %v853 = vsel %vm789, %v713, %v821
        %v854 = vsel %vm790, %v718, %v822
        %v855 = vsel %vm791, %v721, %v823
        %v856 = vsel %vm792, %v726, %v824
        %v857 = vsel %vm793, %v729, %v825
        %v858 = vsel %vm794, %v734, %v826
        %v859 = vsel %vm795, %v737, %v827
        %v860 = vsel %vm796, %v742, %v828
        %v861 = vsel %vm797, %v745, %v829
        %v862 = vsel %vm798, %v750, %v830
        %v863 = vsel %vm799, %v753, %v831
        %v864 = vsel %vm800, %v758, %v832
        %v865 = vsel %vm801, %v761, %v833
        %v866 = vsel %vm802, %v766, %v834
        %v867 = vsel %vm803, %v769, %v835
        %v868 = vpack.c.bf16 %v837, %v836
        %v869 = vpack.c.bf16 %v839, %v838
        %v870 = vpack.c.bf16 %v841, %v840
        %v871 = vpack.c.bf16 %v843, %v842
        %v872 = vpack.c.bf16 %v845, %v844
        %v873 = vpack.c.bf16 %v847, %v846
        %v874 = vpack.c.bf16 %v849, %v848
        %v875 = vpack.c.bf16 %v851, %v850
        %v876 = vpack.c.bf16 %v853, %v852
        %v877 = vpack.c.bf16 %v855, %v854
        %v878 = vpack.c.bf16 %v857, %v856
        %v879 = vpack.c.bf16 %v859, %v858
        %v880 = vpack.c.bf16 %v861, %v860
        %v881 = vpack.c.bf16 %v863, %v862
        %v882 = vpack.c.bf16 %v865, %v864
        %v883 = vpack.c.bf16 %v867, %v866
        %v884 = vld [vmem:[#allocation7] sm:$0xff]
        %v885 = vld [vmem:[#allocation7 + $0x8] sm:$0xff]
        %v886 = vld [vmem:[#allocation7 + $0x10] sm:$0xff]
        %v887 = vld [vmem:[#allocation7 + $0x18] sm:$0xff]
        %v888 = vld [vmem:[#allocation7 + $0x20] sm:$0xff]
        %v889 = vld [vmem:[#allocation7 + $0x28] sm:$0xff]
        %v890 = vld [vmem:[#allocation7 + $0x30] sm:$0xff]
        %v891 = vld [vmem:[#allocation7 + $0x38] sm:$0xff]
        %v892 = vld [vmem:[#allocation7 + $0x40] sm:$0xff]
        %v893 = vld [vmem:[#allocation7 + $0x48] sm:$0xff]
        %v894 = vld [vmem:[#allocation7 + $0x50] sm:$0xff]
        %v895 = vld [vmem:[#allocation7 + $0x58] sm:$0xff]
        %v896 = vld [vmem:[#allocation7 + $0x60] sm:$0xff]
        %v897 = vld [vmem:[#allocation7 + $0x68] sm:$0xff]
        %v898 = vld [vmem:[#allocation7 + $0x70] sm:$0xff]
        %v899 = vld [vmem:[#allocation7 + $0x78] sm:$0xff]
        %v900 = vld [vmem:[%s4] sm:$0x3]
        %v902 = vlaneseq
        %v903 = vshrl.u32 %v902, 7
        %v904 = vsub.s32 0, %v903
        %v905 = vrot.slane %v900, %v904
        %v906 = vlaneseq
        %v907 = vshrl.u32 %v906, 7
        %v908 = vsub.s32 1, %v907
        %v909 = vrot.slane %v900, %v908
        %v928 = vunpack.c.l.b16 %v884
        %v929 = vunpack.c.h.b16 %v884
        %v930 = vunpack.c.l.b16 %v885
        %v931 = vunpack.c.h.b16 %v885
        %v932 = vunpack.c.l.b16 %v886
        %v933 = vunpack.c.h.b16 %v886
        %v934 = vunpack.c.l.b16 %v887
        %v935 = vunpack.c.h.b16 %v887
        %v936 = vunpack.c.l.b16 %v888
        %v937 = vunpack.c.h.b16 %v888
        %v938 = vunpack.c.l.b16 %v889
        %v939 = vunpack.c.h.b16 %v889
        %v940 = vunpack.c.l.b16 %v890
        %v941 = vunpack.c.h.b16 %v890
        %v942 = vunpack.c.l.b16 %v891
        %v943 = vunpack.c.h.b16 %v891
        %v944 = vunpack.c.l.b16 %v892
        %v945 = vunpack.c.h.b16 %v892
        %v946 = vunpack.c.l.b16 %v893
        %v947 = vunpack.c.h.b16 %v893
        %v948 = vunpack.c.l.b16 %v894
        %v949 = vunpack.c.h.b16 %v894
        %v950 = vunpack.c.l.b16 %v895
        %v951 = vunpack.c.h.b16 %v895
        %v952 = vunpack.c.l.b16 %v896
        %v953 = vunpack.c.h.b16 %v896
        %v954 = vunpack.c.l.b16 %v897
        %v955 = vunpack.c.h.b16 %v897
        %v956 = vunpack.c.l.b16 %v898
        %v957 = vunpack.c.h.b16 %v898
        %v958 = vunpack.c.l.b16 %v899
        %v959 = vunpack.c.h.b16 %v899
        %v960 = vpack.c.b16 %v930, %v928
        %v961 = vpack.c.b16 %v931, %v929
        %v962 = vpack.c.b16 %v934, %v932
        %v963 = vpack.c.b16 %v935, %v933
        %v964 = vpack.c.b16 %v938, %v936
        %v965 = vpack.c.b16 %v939, %v937
        %v966 = vpack.c.b16 %v942, %v940
        %v967 = vpack.c.b16 %v943, %v941
        %v968 = vpack.c.b16 %v946, %v944
        %v969 = vpack.c.b16 %v947, %v945
        %v970 = vpack.c.b16 %v950, %v948
        %v971 = vpack.c.b16 %v951, %v949
        %v972 = vpack.c.b16 %v954, %v952
        %v973 = vpack.c.b16 %v955, %v953
        %v974 = vpack.c.b16 %v958, %v956
        %v975 = vpack.c.b16 %v959, %v957
        %992 = vmatprep.subr.bf16.mxu0 %v975
        %993 = vmatpush1.bf16.msra.mxu0 %v974
        %994 = vmatprep.subr.bf16.mxu0 %v973
        %995 = vmatpush1.bf16.msra.mxu0 %v972
        %996 = vmatprep.subr.bf16.mxu0 %v971
        %997 = vmatpush1.bf16.msra.mxu0 %v970
        %998 = vmatprep.subr.bf16.mxu0 %v969
        %999 = vmatpush1.bf16.msra.mxu0 %v968
        %1000 = vmatprep.subr.bf16.mxu0 %v967
        %1001 = vmatpush1.bf16.msra.mxu0 %v966
        %1002 = vmatprep.subr.bf16.mxu0 %v965
        %1003 = vmatpush1.bf16.msra.mxu0 %v964
        %1004 = vmatprep.subr.bf16.mxu0 %v963
        %1005 = vmatpush1.bf16.msra.mxu0 %v962
        %1006 = vmatprep.subr.bf16.mxu0 %v961
        %1007 = vmatpush1.bf16.msra.mxu0 %v960
        %1008 = vmatprep.subr.bf16.mxu0 0
        %1009 = vmatpush2.bf16.msra.mxu0 0
        %1010 = vmatprep.subr.bf16.mxu0 0
        %1011 = vmatpush2.bf16.msra.mxu0 0
        %1012 = vmatprep.subr.bf16.mxu0 0
        %1013 = vmatpush2.bf16.msra.mxu0 0
        %1014 = vmatprep.subr.bf16.mxu0 0
        %1015 = vmatpush2.bf16.msra.mxu0 0
        %1016 = vmatprep.subr.bf16.mxu0 0
        %1017 = vmatpush2.bf16.msra.mxu0 0
        %1018 = vmatprep.subr.bf16.mxu0 0
        %1019 = vmatpush2.bf16.msra.mxu0 0
        %1020 = vmatprep.subr.bf16.mxu0 0
        %1021 = vmatpush2.bf16.msra.mxu0 0
        %1022 = vmatprep.subr.bf16.mxu0 0
        %1023 = vmatpush2.bf16.msra.mxu0 0
        %1024 = vmatprep.mubr.bf16.mxu0 0
        %1025 = vmatmul.mubr.bf16.gmra.mxu0 %v868
        %v1026 = vpop.f32.mrf.mxu0
        %v1027 = vadd.f32 %v905, %v1026
        %v1028 = vpop.f32.mrf.mxu0
        %v1029 = vadd.f32 %v909, %v1028
        %v1030 = vpop.f32.mrf.mxu0
        %v1031 = vadd.f32 %v905, %v1030
        %v1032 = vpop.f32.mrf.mxu0
        %v1033 = vadd.f32 %v909, %v1032
        %1034 = vmatprep.mubr.bf16.mxu0 0
        %1035 = vmatmul.mubr.bf16.gmra.mxu0 %v869
        %v1036 = vpop.f32.mrf.mxu0
        %v1037 = vadd.f32 %v905, %v1036
        %v1038 = vpop.f32.mrf.mxu0
        %v1039 = vadd.f32 %v909, %v1038
        %v1040 = vpop.f32.mrf.mxu0
        %v1041 = vadd.f32 %v905, %v1040
        %v1042 = vpop.f32.mrf.mxu0
        %v1043 = vadd.f32 %v909, %v1042
        %1044 = vmatprep.mubr.bf16.mxu0 0
        %1045 = vmatmul.mubr.bf16.gmra.mxu0 %v870
        %v1046 = vpop.f32.mrf.mxu0
        %v1047 = vadd.f32 %v905, %v1046
        %v1048 = vpop.f32.mrf.mxu0
        %v1049 = vadd.f32 %v909, %v1048
        %v1050 = vpop.f32.mrf.mxu0
        %v1051 = vadd.f32 %v905, %v1050
        %v1052 = vpop.f32.mrf.mxu0
        %v1053 = vadd.f32 %v909, %v1052
        %1054 = vmatprep.mubr.bf16.mxu0 0
        %1055 = vmatmul.mubr.bf16.gmra.mxu0 %v871
        %v1056 = vpop.f32.mrf.mxu0
        %v1057 = vadd.f32 %v905, %v1056
        %v1058 = vpop.f32.mrf.mxu0
        %v1059 = vadd.f32 %v909, %v1058
        %v1060 = vpop.f32.mrf.mxu0
        %v1061 = vadd.f32 %v905, %v1060
        %v1062 = vpop.f32.mrf.mxu0
        %v1063 = vadd.f32 %v909, %v1062
        %1064 = vmatprep.mubr.bf16.mxu0 0
        %1065 = vmatmul.mubr.bf16.gmra.mxu0 %v872
        %v1066 = vpop.f32.mrf.mxu0
        %v1067 = vadd.f32 %v905, %v1066
        %v1068 = vpop.f32.mrf.mxu0
        %v1069 = vadd.f32 %v909, %v1068
        %v1070 = vpop.f32.mrf.mxu0
        %v1071 = vadd.f32 %v905, %v1070
        %v1072 = vpop.f32.mrf.mxu0
        %v1073 = vadd.f32 %v909, %v1072
        %1074 = vmatprep.mubr.bf16.mxu0 0
        %1075 = vmatmul.mubr.bf16.gmra.mxu0 %v873
        %v1076 = vpop.f32.mrf.mxu0
        %v1077 = vadd.f32 %v905, %v1076
        %v1078 = vpop.f32.mrf.mxu0
        %v1079 = vadd.f32 %v909, %v1078
        %v1080 = vpop.f32.mrf.mxu0
        %v1081 = vadd.f32 %v905, %v1080
        %v1082 = vpop.f32.mrf.mxu0
        %v1083 = vadd.f32 %v909, %v1082
        %1084 = vmatprep.mubr.bf16.mxu0 0
        %1085 = vmatmul.mubr.bf16.gmra.mxu0 %v874
        %v1086 = vpop.f32.mrf.mxu0
        %v1087 = vadd.f32 %v905, %v1086
        %v1088 = vpop.f32.mrf.mxu0
        %v1089 = vadd.f32 %v909, %v1088
        %v1090 = vpop.f32.mrf.mxu0
        %v1091 = vadd.f32 %v905, %v1090
        %v1092 = vpop.f32.mrf.mxu0
        %v1093 = vadd.f32 %v909, %v1092
        %1094 = vmatprep.mubr.bf16.mxu0 0
        %1095 = vmatmul.mubr.bf16.gmra.mxu0 %v875
        %v1096 = vpop.f32.mrf.mxu0
        %v1097 = vadd.f32 %v905, %v1096
        %v1098 = vpop.f32.mrf.mxu0
        %v1099 = vadd.f32 %v909, %v1098
        %v1100 = vpop.f32.mrf.mxu0
        %v1101 = vadd.f32 %v905, %v1100
        %v1102 = vpop.f32.mrf.mxu0
        %v1103 = vadd.f32 %v909, %v1102
        %1104 = vmatprep.mubr.bf16.mxu0 0
        %1105 = vmatmul.mubr.bf16.gmra.mxu0 %v876
        %v1106 = vpop.f32.mrf.mxu0
        %v1107 = vadd.f32 %v905, %v1106
        %v1108 = vpop.f32.mrf.mxu0
        %v1109 = vadd.f32 %v909, %v1108
        %v1110 = vpop.f32.mrf.mxu0
        %v1111 = vadd.f32 %v905, %v1110
        %v1112 = vpop.f32.mrf.mxu0
        %v1113 = vadd.f32 %v909, %v1112
        %1114 = vmatprep.mubr.bf16.mxu0 0
        %1115 = vmatmul.mubr.bf16.gmra.mxu0 %v877
        %v1116 = vpop.f32.mrf.mxu0
        %v1117 = vadd.f32 %v905, %v1116
        %v1118 = vpop.f32.mrf.mxu0
        %v1119 = vadd.f32 %v909, %v1118
        %v1120 = vpop.f32.mrf.mxu0
        %v1121 = vadd.f32 %v905, %v1120
        %v1122 = vpop.f32.mrf.mxu0
        %v1123 = vadd.f32 %v909, %v1122
        %1124 = vmatprep.mubr.bf16.mxu0 0
        %1125 = vmatmul.mubr.bf16.gmra.mxu0 %v878
        %v1126 = vpop.f32.mrf.mxu0
        %v1127 = vadd.f32 %v905, %v1126
        %v1128 = vpop.f32.mrf.mxu0
        %v1129 = vadd.f32 %v909, %v1128
        %v1130 = vpop.f32.mrf.mxu0
        %v1131 = vadd.f32 %v905, %v1130
        %v1132 = vpop.f32.mrf.mxu0
        %v1133 = vadd.f32 %v909, %v1132
        %1134 = vmatprep.mubr.bf16.mxu0 0
        %1135 = vmatmul.mubr.bf16.gmra.mxu0 %v879
        %v1136 = vpop.f32.mrf.mxu0
        %v1137 = vadd.f32 %v905, %v1136
        %v1138 = vpop.f32.mrf.mxu0
        %v1139 = vadd.f32 %v909, %v1138
        %v1140 = vpop.f32.mrf.mxu0
        %v1141 = vadd.f32 %v905, %v1140
        %v1142 = vpop.f32.mrf.mxu0
        %v1143 = vadd.f32 %v909, %v1142
        %1144 = vmatprep.mubr.bf16.mxu0 0
        %1145 = vmatmul.mubr.bf16.gmra.mxu0 %v880
        %v1146 = vpop.f32.mrf.mxu0
        %v1147 = vadd.f32 %v905, %v1146
        %v1148 = vpop.f32.mrf.mxu0
        %v1149 = vadd.f32 %v909, %v1148
        %v1150 = vpop.f32.mrf.mxu0
        %v1151 = vadd.f32 %v905, %v1150
        %v1152 = vpop.f32.mrf.mxu0
        %v1153 = vadd.f32 %v909, %v1152
        %1154 = vmatprep.mubr.bf16.mxu0 0
        %1155 = vmatmul.mubr.bf16.gmra.mxu0 %v881
        %v1156 = vpop.f32.mrf.mxu0
        %v1157 = vadd.f32 %v905, %v1156
        %v1158 = vpop.f32.mrf.mxu0
        %v1159 = vadd.f32 %v909, %v1158
        %v1160 = vpop.f32.mrf.mxu0
        %v1161 = vadd.f32 %v905, %v1160
        %v1162 = vpop.f32.mrf.mxu0
        %v1163 = vadd.f32 %v909, %v1162
        %1164 = vmatprep.mubr.bf16.mxu0 0
        %1165 = vmatmul.mubr.bf16.gmra.mxu0 %v882
        %v1166 = vpop.f32.mrf.mxu0
        %v1167 = vadd.f32 %v905, %v1166
        %v1168 = vpop.f32.mrf.mxu0
        %v1169 = vadd.f32 %v909, %v1168
        %v1170 = vpop.f32.mrf.mxu0
        %v1171 = vadd.f32 %v905, %v1170
        %v1172 = vpop.f32.mrf.mxu0
        %v1173 = vadd.f32 %v909, %v1172
        %1174 = vmatprep.mubr.bf16.mxu0 0
        %1175 = vmatmul.mubr.bf16.gmra.mxu0 %v883
        %v1176 = vpop.f32.mrf.mxu0
        %v1177 = vadd.f32 %v905, %v1176
        %v1178 = vpop.f32.mrf.mxu0
        %v1179 = vadd.f32 %v909, %v1178
        %v1180 = vpop.f32.mrf.mxu0
        %v1181 = vadd.f32 %v905, %v1180
        %v1182 = vpop.f32.mrf.mxu0
        %v1183 = vadd.f32 %v909, %v1182
        %1184 = vdwg.mxu0
        %vm1185 = vcmp.gt.f32.partialorder %v1027, 0.0
        %vm1186 = vcmp.gt.f32.partialorder %v1029, 0.0
        %vm1187 = vcmp.gt.f32.partialorder %v1031, 0.0
        %vm1188 = vcmp.gt.f32.partialorder %v1033, 0.0
        %vm1189 = vcmp.gt.f32.partialorder %v1037, 0.0
        %vm1190 = vcmp.gt.f32.partialorder %v1039, 0.0
        %vm1191 = vcmp.gt.f32.partialorder %v1041, 0.0
        %vm1192 = vcmp.gt.f32.partialorder %v1043, 0.0
        %vm1193 = vcmp.gt.f32.partialorder %v1047, 0.0
        %vm1194 = vcmp.gt.f32.partialorder %v1049, 0.0
        %vm1195 = vcmp.gt.f32.partialorder %v1051, 0.0
        %vm1196 = vcmp.gt.f32.partialorder %v1053, 0.0
        %vm1197 = vcmp.gt.f32.partialorder %v1057, 0.0
        %vm1198 = vcmp.gt.f32.partialorder %v1059, 0.0
        %vm1199 = vcmp.gt.f32.partialorder %v1061, 0.0
        %vm1200 = vcmp.gt.f32.partialorder %v1063, 0.0
        %vm1201 = vcmp.gt.f32.partialorder %v1067, 0.0
        %vm1202 = vcmp.gt.f32.partialorder %v1069, 0.0
        %vm1203 = vcmp.gt.f32.partialorder %v1071, 0.0
        %vm1204 = vcmp.gt.f32.partialorder %v1073, 0.0
        %vm1205 = vcmp.gt.f32.partialorder %v1077, 0.0
        %vm1206 = vcmp.gt.f32.partialorder %v1079, 0.0
        %vm1207 = vcmp.gt.f32.partialorder %v1081, 0.0
        %vm1208 = vcmp.gt.f32.partialorder %v1083, 0.0
        %vm1209 = vcmp.gt.f32.partialorder %v1087, 0.0
        %vm1210 = vcmp.gt.f32.partialorder %v1089, 0.0
        %vm1211 = vcmp.gt.f32.partialorder %v1091, 0.0
        %vm1212 = vcmp.gt.f32.partialorder %v1093, 0.0
        %vm1213 = vcmp.gt.f32.partialorder %v1097, 0.0
        %vm1214 = vcmp.gt.f32.partialorder %v1099, 0.0
        %vm1215 = vcmp.gt.f32.partialorder %v1101, 0.0
        %vm1216 = vcmp.gt.f32.partialorder %v1103, 0.0
        %vm1217 = vcmp.gt.f32.partialorder %v1107, 0.0
        %vm1218 = vcmp.gt.f32.partialorder %v1109, 0.0
        %vm1219 = vcmp.gt.f32.partialorder %v1111, 0.0
        %vm1220 = vcmp.gt.f32.partialorder %v1113, 0.0
        %vm1221 = vcmp.gt.f32.partialorder %v1117, 0.0
        %vm1222 = vcmp.gt.f32.partialorder %v1119, 0.0
        %vm1223 = vcmp.gt.f32.partialorder %v1121, 0.0
        %vm1224 = vcmp.gt.f32.partialorder %v1123, 0.0
        %vm1225 = vcmp.gt.f32.partialorder %v1127, 0.0
        %vm1226 = vcmp.gt.f32.partialorder %v1129, 0.0
        %vm1227 = vcmp.gt.f32.partialorder %v1131, 0.0
        %vm1228 = vcmp.gt.f32.partialorder %v1133, 0.0
        %vm1229 = vcmp.gt.f32.partialorder %v1137, 0.0
        %vm1230 = vcmp.gt.f32.partialorder %v1139, 0.0
        %vm1231 = vcmp.gt.f32.partialorder %v1141, 0.0
        %vm1232 = vcmp.gt.f32.partialorder %v1143, 0.0
        %vm1233 = vcmp.gt.f32.partialorder %v1147, 0.0
        %vm1234 = vcmp.gt.f32.partialorder %v1149, 0.0
        %vm1235 = vcmp.gt.f32.partialorder %v1151, 0.0
        %vm1236 = vcmp.gt.f32.partialorder %v1153, 0.0
        %vm1237 = vcmp.gt.f32.partialorder %v1157, 0.0
        %vm1238 = vcmp.gt.f32.partialorder %v1159, 0.0
        %vm1239 = vcmp.gt.f32.partialorder %v1161, 0.0
        %vm1240 = vcmp.gt.f32.partialorder %v1163, 0.0
        %vm1241 = vcmp.gt.f32.partialorder %v1167, 0.0
        %vm1242 = vcmp.gt.f32.partialorder %v1169, 0.0
        %vm1243 = vcmp.gt.f32.partialorder %v1171, 0.0
        %vm1244 = vcmp.gt.f32.partialorder %v1173, 0.0
        %vm1245 = vcmp.gt.f32.partialorder %v1177, 0.0
        %vm1246 = vcmp.gt.f32.partialorder %v1179, 0.0
        %vm1247 = vcmp.gt.f32.partialorder %v1181, 0.0
        %vm1248 = vcmp.gt.f32.partialorder %v1183, 0.0
        %v1249 = vmul.f32 %v1027, 0.01
        %v1250 = vmul.f32 %v1029, 0.01
        %v1251 = vmul.f32 %v1031, 0.01
        %v1252 = vmul.f32 %v1033, 0.01
        %v1253 = vmul.f32 %v1037, 0.01
        %v1254 = vmul.f32 %v1039, 0.01
        %v1255 = vmul.f32 %v1041, 0.01
        %v1256 = vmul.f32 %v1043, 0.01
        %v1257 = vmul.f32 %v1047, 0.01
        %v1258 = vmul.f32 %v1049, 0.01
        %v1259 = vmul.f32 %v1051, 0.01
        %v1260 = vmul.f32 %v1053, 0.01
        %v1261 = vmul.f32 %v1057, 0.01
        %v1262 = vmul.f32 %v1059, 0.01
        %v1263 = vmul.f32 %v1061, 0.01
        %v1264 = vmul.f32 %v1063, 0.01
        %v1265 = vmul.f32 %v1067, 0.01
        %v1266 = vmul.f32 %v1069, 0.01
        %v1267 = vmul.f32 %v1071, 0.01
        %v1268 = vmul.f32 %v1073, 0.01
        %v1269 = vmul.f32 %v1077, 0.01
        %v1270 = vmul.f32 %v1079, 0.01
        %v1271 = vmul.f32 %v1081, 0.01
        %v1272 = vmul.f32 %v1083, 0.01
        %v1273 = vmul.f32 %v1087, 0.01
        %v1274 = vmul.f32 %v1089, 0.01
        %v1275 = vmul.f32 %v1091, 0.01
        %v1276 = vmul.f32 %v1093, 0.01
        %v1277 = vmul.f32 %v1097, 0.01
        %v1278 = vmul.f32 %v1099, 0.01
        %v1279 = vmul.f32 %v1101, 0.01
        %v1280 = vmul.f32 %v1103, 0.01
        %v1281 = vmul.f32 %v1107, 0.01
        %v1282 = vmul.f32 %v1109, 0.01
        %v1283 = vmul.f32 %v1111, 0.01
        %v1284 = vmul.f32 %v1113, 0.01
        %v1285 = vmul.f32 %v1117, 0.01
        %v1286 = vmul.f32 %v1119, 0.01
        %v1287 = vmul.f32 %v1121, 0.01
        %v1288 = vmul.f32 %v1123, 0.01
        %v1289 = vmul.f32 %v1127, 0.01
        %v1290 = vmul.f32 %v1129, 0.01
        %v1291 = vmul.f32 %v1131, 0.01
        %v1292 = vmul.f32 %v1133, 0.01
        %v1293 = vmul.f32 %v1137, 0.01
        %v1294 = vmul.f32 %v1139, 0.01
        %v1295 = vmul.f32 %v1141, 0.01
        %v1296 = vmul.f32 %v1143, 0.01
        %v1297 = vmul.f32 %v1147, 0.01
        %v1298 = vmul.f32 %v1149, 0.01
        %v1299 = vmul.f32 %v1151, 0.01
        %v1300 = vmul.f32 %v1153, 0.01
        %v1301 = vmul.f32 %v1157, 0.01
        %v1302 = vmul.f32 %v1159, 0.01
        %v1303 = vmul.f32 %v1161, 0.01
        %v1304 = vmul.f32 %v1163, 0.01
        %v1305 = vmul.f32 %v1167, 0.01
        %v1306 = vmul.f32 %v1169, 0.01
        %v1307 = vmul.f32 %v1171, 0.01
        %v1308 = vmul.f32 %v1173, 0.01
        %v1309 = vmul.f32 %v1177, 0.01
        %v1310 = vmul.f32 %v1179, 0.01
        %v1311 = vmul.f32 %v1181, 0.01
        %v1312 = vmul.f32 %v1183, 0.01
        %v1313 = vsel %vm1185, %v1027, %v1249
        %v1314 = vsel %vm1186, %v1029, %v1250
        %v1315 = vsel %vm1187, %v1031, %v1251
        %v1316 = vsel %vm1188, %v1033, %v1252
        %v1317 = vsel %vm1189, %v1037, %v1253
        %v1318 = vsel %vm1190, %v1039, %v1254
        %v1319 = vsel %vm1191, %v1041, %v1255
        %v1320 = vsel %vm1192, %v1043, %v1256
        %v1321 = vsel %vm1193, %v1047, %v1257
        %v1322 = vsel %vm1194, %v1049, %v1258
        %v1323 = vsel %vm1195, %v1051, %v1259
        %v1324 = vsel %vm1196, %v1053, %v1260
        %v1325 = vsel %vm1197, %v1057, %v1261
        %v1326 = vsel %vm1198, %v1059, %v1262
        %v1327 = vsel %vm1199, %v1061, %v1263
        %v1328 = vsel %vm1200, %v1063, %v1264
        %v1329 = vsel %vm1201, %v1067, %v1265
        %v1330 = vsel %vm1202, %v1069, %v1266
        %v1331 = vsel %vm1203, %v1071, %v1267
        %v1332 = vsel %vm1204, %v1073, %v1268
        %v1333 = vsel %vm1205, %v1077, %v1269
        %v1334 = vsel %vm1206, %v1079, %v1270
        %v1335 = vsel %vm1207, %v1081, %v1271
        %v1336 = vsel %vm1208, %v1083, %v1272
        %v1337 = vsel %vm1209, %v1087, %v1273
        %v1338 = vsel %vm1210, %v1089, %v1274
        %v1339 = vsel %vm1211, %v1091, %v1275
        %v1340 = vsel %vm1212, %v1093, %v1276
        %v1341 = vsel %vm1213, %v1097, %v1277
        %v1342 = vsel %vm1214, %v1099, %v1278
        %v1343 = vsel %vm1215, %v1101, %v1279
        %v1344 = vsel %vm1216, %v1103, %v1280
        %v1345 = vsel %vm1217, %v1107, %v1281
        %v1346 = vsel %vm1218, %v1109, %v1282
        %v1347 = vsel %vm1219, %v1111, %v1283
        %v1348 = vsel %vm1220, %v1113, %v1284
        %v1349 = vsel %vm1221, %v1117, %v1285
        %v1350 = vsel %vm1222, %v1119, %v1286
        %v1351 = vsel %vm1223, %v1121, %v1287
        %v1352 = vsel %vm1224, %v1123, %v1288
        %v1353 = vsel %vm1225, %v1127, %v1289
        %v1354 = vsel %vm1226, %v1129, %v1290
        %v1355 = vsel %vm1227, %v1131, %v1291
        %v1356 = vsel %vm1228, %v1133, %v1292
        %v1357 = vsel %vm1229, %v1137, %v1293
        %v1358 = vsel %vm1230, %v1139, %v1294
        %v1359 = vsel %vm1231, %v1141, %v1295
        %v1360 = vsel %vm1232, %v1143, %v1296
        %v1361 = vsel %vm1233, %v1147, %v1297
        %v1362 = vsel %vm1234, %v1149, %v1298
        %v1363 = vsel %vm1235, %v1151, %v1299
        %v1364 = vsel %vm1236, %v1153, %v1300
        %v1365 = vsel %vm1237, %v1157, %v1301
        %v1366 = vsel %vm1238, %v1159, %v1302
        %v1367 = vsel %vm1239, %v1161, %v1303
        %v1368 = vsel %vm1240, %v1163, %v1304
        %v1369 = vsel %vm1241, %v1167, %v1305
        %v1370 = vsel %vm1242, %v1169, %v1306
        %v1371 = vsel %vm1243, %v1171, %v1307
        %v1372 = vsel %vm1244, %v1173, %v1308
        %v1373 = vsel %vm1245, %v1177, %v1309
        %v1374 = vsel %vm1246, %v1179, %v1310
        %v1375 = vsel %vm1247, %v1181, %v1311
        %v1376 = vsel %vm1248, %v1183, %v1312
        %v1377 = vpack.c.bf16 %v1315, %v1313
        %v1378 = vpack.c.bf16 %v1316, %v1314
        %v1379 = vpack.c.bf16 %v1319, %v1317
        %v1380 = vpack.c.bf16 %v1320, %v1318
        %v1381 = vpack.c.bf16 %v1323, %v1321
        %v1382 = vpack.c.bf16 %v1324, %v1322
        %v1383 = vpack.c.bf16 %v1327, %v1325
        %v1384 = vpack.c.bf16 %v1328, %v1326
        %v1385 = vpack.c.bf16 %v1331, %v1329
        %v1386 = vpack.c.bf16 %v1332, %v1330
        %v1387 = vpack.c.bf16 %v1335, %v1333
        %v1388 = vpack.c.bf16 %v1336, %v1334
        %v1389 = vpack.c.bf16 %v1339, %v1337
        %v1390 = vpack.c.bf16 %v1340, %v1338
        %v1391 = vpack.c.bf16 %v1343, %v1341
        %v1392 = vpack.c.bf16 %v1344, %v1342
        %v1393 = vpack.c.bf16 %v1347, %v1345
        %v1394 = vpack.c.bf16 %v1348, %v1346
        %v1395 = vpack.c.bf16 %v1351, %v1349
        %v1396 = vpack.c.bf16 %v1352, %v1350
        %v1397 = vpack.c.bf16 %v1355, %v1353
        %v1398 = vpack.c.bf16 %v1356, %v1354
        %v1399 = vpack.c.bf16 %v1359, %v1357
        %v1400 = vpack.c.bf16 %v1360, %v1358
        %v1401 = vpack.c.bf16 %v1363, %v1361
        %v1402 = vpack.c.bf16 %v1364, %v1362
        %v1403 = vpack.c.bf16 %v1367, %v1365
        %v1404 = vpack.c.bf16 %v1368, %v1366
        %v1405 = vpack.c.bf16 %v1371, %v1369
        %v1406 = vpack.c.bf16 %v1372, %v1370
        %v1407 = vpack.c.bf16 %v1375, %v1373
        %v1408 = vpack.c.bf16 %v1376, %v1374
        %v1409 = vld [vmem:[#allocation8] sm:$0xf]
        %v1410 = vld [vmem:[#allocation8 + $0x4] sm:$0xf]
        %v1411 = vld [vmem:[#allocation8 + $0x8] sm:$0xf]
        %v1412 = vld [vmem:[#allocation8 + $0xc] sm:$0xf]
        %v1413 = vld [vmem:[#allocation8 + $0x10] sm:$0xf]
        %v1414 = vld [vmem:[#allocation8 + $0x14] sm:$0xf]
        %v1415 = vld [vmem:[#allocation8 + $0x18] sm:$0xf]
        %v1416 = vld [vmem:[#allocation8 + $0x1c] sm:$0xf]
        %v1417 = vld [vmem:[#allocation8 + $0x20] sm:$0xf]
        %v1418 = vld [vmem:[#allocation8 + $0x24] sm:$0xf]
        %v1419 = vld [vmem:[#allocation8 + $0x28] sm:$0xf]
        %v1420 = vld [vmem:[#allocation8 + $0x2c] sm:$0xf]
        %v1421 = vld [vmem:[#allocation8 + $0x30] sm:$0xf]
        %v1422 = vld [vmem:[#allocation8 + $0x34] sm:$0xf]
        %v1423 = vld [vmem:[#allocation8 + $0x38] sm:$0xf]
        %v1424 = vld [vmem:[#allocation8 + $0x3c] sm:$0xf]
        %v1425 = vld [vmem:[#allocation8 + $0x40] sm:$0xf]
        %v1426 = vld [vmem:[#allocation8 + $0x44] sm:$0xf]
        %v1427 = vld [vmem:[#allocation8 + $0x48] sm:$0xf]
        %v1428 = vld [vmem:[#allocation8 + $0x4c] sm:$0xf]
        %v1429 = vld [vmem:[#allocation8 + $0x50] sm:$0xf]
        %v1430 = vld [vmem:[#allocation8 + $0x54] sm:$0xf]
        %v1431 = vld [vmem:[#allocation8 + $0x58] sm:$0xf]
        %v1432 = vld [vmem:[#allocation8 + $0x5c] sm:$0xf]
        %v1433 = vld [vmem:[#allocation8 + $0x60] sm:$0xf]
        %v1434 = vld [vmem:[#allocation8 + $0x64] sm:$0xf]
        %v1435 = vld [vmem:[#allocation8 + $0x68] sm:$0xf]
        %v1436 = vld [vmem:[#allocation8 + $0x6c] sm:$0xf]
        %v1437 = vld [vmem:[#allocation8 + $0x70] sm:$0xf]
        %v1438 = vld [vmem:[#allocation8 + $0x74] sm:$0xf]
        %v1439 = vld [vmem:[#allocation8 + $0x78] sm:$0xf]
        %v1440 = vld [vmem:[#allocation8 + $0x7c] sm:$0xf]
        %v1441 = vld [vmem:[%s6] sm:$0x1]
        %v1443 = vlaneseq
        %v1444 = vshrl.u32 %v1443, 7
        %v1445 = vsub.s32 0, %v1444
        %v1446 = vrot.slane %v1441, %v1445
        %v1480 = vunpack.c.l.b16 %v1409
        %v1481 = vunpack.c.l.b16 %v1410
        %v1482 = vunpack.c.l.b16 %v1411
        %v1483 = vunpack.c.l.b16 %v1412
        %v1484 = vunpack.c.l.b16 %v1413
        %v1485 = vunpack.c.l.b16 %v1414
        %v1486 = vunpack.c.l.b16 %v1415
        %v1487 = vunpack.c.l.b16 %v1416
        %v1488 = vunpack.c.l.b16 %v1417
        %v1489 = vunpack.c.l.b16 %v1418
        %v1490 = vunpack.c.l.b16 %v1419
        %v1491 = vunpack.c.l.b16 %v1420
        %v1492 = vunpack.c.l.b16 %v1421
        %v1493 = vunpack.c.l.b16 %v1422
        %v1494 = vunpack.c.l.b16 %v1423
        %v1495 = vunpack.c.l.b16 %v1424
        %v1496 = vunpack.c.l.b16 %v1425
        %v1497 = vunpack.c.l.b16 %v1426
        %v1498 = vunpack.c.l.b16 %v1427
        %v1499 = vunpack.c.l.b16 %v1428
        %v1500 = vunpack.c.l.b16 %v1429
        %v1501 = vunpack.c.l.b16 %v1430
        %v1502 = vunpack.c.l.b16 %v1431
        %v1503 = vunpack.c.l.b16 %v1432
        %v1504 = vunpack.c.l.b16 %v1433
        %v1505 = vunpack.c.l.b16 %v1434
        %v1506 = vunpack.c.l.b16 %v1435
        %v1507 = vunpack.c.l.b16 %v1436
        %v1508 = vunpack.c.l.b16 %v1437
        %v1509 = vunpack.c.l.b16 %v1438
        %v1510 = vunpack.c.l.b16 %v1439
        %v1511 = vunpack.c.l.b16 %v1440
        %v1512 = vpack.c.b16 %v1481, %v1480
        %v1513 = vpack.c.b16 %v1483, %v1482
        %v1514 = vpack.c.b16 %v1485, %v1484
        %v1515 = vpack.c.b16 %v1487, %v1486
        %v1516 = vpack.c.b16 %v1489, %v1488
        %v1517 = vpack.c.b16 %v1491, %v1490
        %v1518 = vpack.c.b16 %v1493, %v1492
        %v1519 = vpack.c.b16 %v1495, %v1494
        %v1520 = vpack.c.b16 %v1497, %v1496
        %v1521 = vpack.c.b16 %v1499, %v1498
        %v1522 = vpack.c.b16 %v1501, %v1500
        %v1523 = vpack.c.b16 %v1503, %v1502
        %v1524 = vpack.c.b16 %v1505, %v1504
        %v1525 = vpack.c.b16 %v1507, %v1506
        %v1526 = vpack.c.b16 %v1509, %v1508
        %v1527 = vpack.c.b16 %v1511, %v1510
        %1544 = vmatprep.subr.bf16.mxu0 0
        %1545 = vmatpush1.bf16.msra.mxu0 %v1519
        %1546 = vmatprep.subr.bf16.mxu0 0
        %1547 = vmatpush1.bf16.msra.mxu0 %v1518
        %1548 = vmatprep.subr.bf16.mxu0 0
        %1549 = vmatpush1.bf16.msra.mxu0 %v1517
        %1550 = vmatprep.subr.bf16.mxu0 0
        %1551 = vmatpush1.bf16.msra.mxu0 %v1516
        %1552 = vmatprep.subr.bf16.mxu0 0
        %1553 = vmatpush1.bf16.msra.mxu0 %v1515
        %1554 = vmatprep.subr.bf16.mxu0 0
        %1555 = vmatpush1.bf16.msra.mxu0 %v1514
        %1556 = vmatprep.subr.bf16.mxu0 0
        %1557 = vmatpush1.bf16.msra.mxu0 %v1513
        %1558 = vmatprep.subr.bf16.mxu0 0
        %1559 = vmatpush1.bf16.msra.mxu0 %v1512
        %1560 = vmatprep.subr.bf16.mxu0 0
        %1561 = vmatpush2.bf16.msra.mxu0 %v1527
        %1562 = vmatprep.subr.bf16.mxu0 0
        %1563 = vmatpush2.bf16.msra.mxu0 %v1526
        %1564 = vmatprep.subr.bf16.mxu0 0
        %1565 = vmatpush2.bf16.msra.mxu0 %v1525
        %1566 = vmatprep.subr.bf16.mxu0 0
        %1567 = vmatpush2.bf16.msra.mxu0 %v1524
        %1568 = vmatprep.subr.bf16.mxu0 0
        %1569 = vmatpush2.bf16.msra.mxu0 %v1523
        %1570 = vmatprep.subr.bf16.mxu0 0
        %1571 = vmatpush2.bf16.msra.mxu0 %v1522
        %1572 = vmatprep.subr.bf16.mxu0 0
        %1573 = vmatpush2.bf16.msra.mxu0 %v1521
        %1574 = vmatprep.subr.bf16.mxu0 0
        %1575 = vmatpush2.bf16.msra.mxu0 %v1520
        %1576 = vmatprep.mubr.bf16.mxu0 %v1378
        %1577 = vmatmul.mubr.bf16.gmra.mxu0 %v1377
        %v1578 = vpop.f32.mrf.mxu0
        %v1579 = vadd.f32 %v1446, %v1578
        %v1580 = vpop.f32.mrf.mxu0
        %v1581 = vpop.f32.mrf.mxu0
        %v1582 = vadd.f32 %v1446, %v1581
        %v1583 = vpop.f32.mrf.mxu0
        %1584 = vmatprep.mubr.bf16.mxu0 %v1380
        %1585 = vmatmul.mubr.bf16.gmra.mxu0 %v1379
        %v1586 = vpop.f32.mrf.mxu0
        %v1587 = vadd.f32 %v1446, %v1586
        %v1588 = vpop.f32.mrf.mxu0
        %v1589 = vpop.f32.mrf.mxu0
        %v1590 = vadd.f32 %v1446, %v1589
        %v1591 = vpop.f32.mrf.mxu0
        %1592 = vmatprep.mubr.bf16.mxu0 %v1382
        %1593 = vmatmul.mubr.bf16.gmra.mxu0 %v1381
        %v1594 = vpop.f32.mrf.mxu0
        %v1595 = vadd.f32 %v1446, %v1594
        %v1596 = vpop.f32.mrf.mxu0
        %v1597 = vpop.f32.mrf.mxu0
        %v1598 = vadd.f32 %v1446, %v1597
        %v1599 = vpop.f32.mrf.mxu0
        %1600 = vmatprep.mubr.bf16.mxu0 %v1384
        %1601 = vmatmul.mubr.bf16.gmra.mxu0 %v1383
        %v1602 = vpop.f32.mrf.mxu0
        %v1603 = vadd.f32 %v1446, %v1602
        %v1604 = vpop.f32.mrf.mxu0
        %v1605 = vpop.f32.mrf.mxu0
        %v1606 = vadd.f32 %v1446, %v1605
        %v1607 = vpop.f32.mrf.mxu0
        %1608 = vmatprep.mubr.bf16.mxu0 %v1386
        %1609 = vmatmul.mubr.bf16.gmra.mxu0 %v1385
        %v1610 = vpop.f32.mrf.mxu0
        %v1611 = vadd.f32 %v1446, %v1610
        %v1612 = vpop.f32.mrf.mxu0
        %v1613 = vpop.f32.mrf.mxu0
        %v1614 = vadd.f32 %v1446, %v1613
        %v1615 = vpop.f32.mrf.mxu0
        %1616 = vmatprep.mubr.bf16.mxu0 %v1388
        %1617 = vmatmul.mubr.bf16.gmra.mxu0 %v1387
        %v1618 = vpop.f32.mrf.mxu0
        %v1619 = vadd.f32 %v1446, %v1618
        %v1620 = vpop.f32.mrf.mxu0
        %v1621 = vpop.f32.mrf.mxu0
        %v1622 = vadd.f32 %v1446, %v1621
        %v1623 = vpop.f32.mrf.mxu0
        %1624 = vmatprep.mubr.bf16.mxu0 %v1390
        %1625 = vmatmul.mubr.bf16.gmra.mxu0 %v1389
        %v1626 = vpop.f32.mrf.mxu0
        %v1627 = vadd.f32 %v1446, %v1626
        %v1628 = vpop.f32.mrf.mxu0
        %v1629 = vpop.f32.mrf.mxu0
        %v1630 = vadd.f32 %v1446, %v1629
        %v1631 = vpop.f32.mrf.mxu0
        %1632 = vmatprep.mubr.bf16.mxu0 %v1392
        %1633 = vmatmul.mubr.bf16.gmra.mxu0 %v1391
        %v1634 = vpop.f32.mrf.mxu0
        %v1635 = vadd.f32 %v1446, %v1634
        %v1636 = vpop.f32.mrf.mxu0
        %v1637 = vpop.f32.mrf.mxu0
        %v1638 = vadd.f32 %v1446, %v1637
        %v1639 = vpop.f32.mrf.mxu0
        %1640 = vmatprep.mubr.bf16.mxu0 %v1394
        %1641 = vmatmul.mubr.bf16.gmra.mxu0 %v1393
        %v1642 = vpop.f32.mrf.mxu0
        %v1643 = vadd.f32 %v1446, %v1642
        %v1644 = vpop.f32.mrf.mxu0
        %v1645 = vpop.f32.mrf.mxu0
        %v1646 = vadd.f32 %v1446, %v1645
        %v1647 = vpop.f32.mrf.mxu0
        %1648 = vmatprep.mubr.bf16.mxu0 %v1396
        %1649 = vmatmul.mubr.bf16.gmra.mxu0 %v1395
        %v1650 = vpop.f32.mrf.mxu0
        %v1651 = vadd.f32 %v1446, %v1650
        %v1652 = vpop.f32.mrf.mxu0
        %v1653 = vpop.f32.mrf.mxu0
        %v1654 = vadd.f32 %v1446, %v1653
        %v1655 = vpop.f32.mrf.mxu0
        %1656 = vmatprep.mubr.bf16.mxu0 %v1398
        %1657 = vmatmul.mubr.bf16.gmra.mxu0 %v1397
        %v1658 = vpop.f32.mrf.mxu0
        %v1659 = vadd.f32 %v1446, %v1658
        %v1660 = vpop.f32.mrf.mxu0
        %v1661 = vpop.f32.mrf.mxu0
        %v1662 = vadd.f32 %v1446, %v1661
        %v1663 = vpop.f32.mrf.mxu0
        %1664 = vmatprep.mubr.bf16.mxu0 %v1400
        %1665 = vmatmul.mubr.bf16.gmra.mxu0 %v1399
        %v1666 = vpop.f32.mrf.mxu0
        %v1667 = vadd.f32 %v1446, %v1666
        %v1668 = vpop.f32.mrf.mxu0
        %v1669 = vpop.f32.mrf.mxu0
        %v1670 = vadd.f32 %v1446, %v1669
        %v1671 = vpop.f32.mrf.mxu0
        %1672 = vmatprep.mubr.bf16.mxu0 %v1402
        %1673 = vmatmul.mubr.bf16.gmra.mxu0 %v1401
        %v1674 = vpop.f32.mrf.mxu0
        %v1675 = vadd.f32 %v1446, %v1674
        %v1676 = vpop.f32.mrf.mxu0
        %v1677 = vpop.f32.mrf.mxu0
        %v1678 = vadd.f32 %v1446, %v1677
        %v1679 = vpop.f32.mrf.mxu0
        %1680 = vmatprep.mubr.bf16.mxu0 %v1404
        %1681 = vmatmul.mubr.bf16.gmra.mxu0 %v1403
        %v1682 = vpop.f32.mrf.mxu0
        %v1683 = vadd.f32 %v1446, %v1682
        %v1684 = vpop.f32.mrf.mxu0
        %v1685 = vpop.f32.mrf.mxu0
        %v1686 = vadd.f32 %v1446, %v1685
        %v1687 = vpop.f32.mrf.mxu0
        %1688 = vmatprep.mubr.bf16.mxu0 %v1406
        %1689 = vmatmul.mubr.bf16.gmra.mxu0 %v1405
        %v1690 = vpop.f32.mrf.mxu0
        %v1691 = vadd.f32 %v1446, %v1690
        %v1692 = vpop.f32.mrf.mxu0
        %v1693 = vpop.f32.mrf.mxu0
        %v1694 = vadd.f32 %v1446, %v1693
        %v1695 = vpop.f32.mrf.mxu0
        %1696 = vmatprep.mubr.bf16.mxu0 %v1408
        %1697 = vmatmul.mubr.bf16.gmra.mxu0 %v1407
        %v1698 = vpop.f32.mrf.mxu0
        %v1699 = vadd.f32 %v1446, %v1698
        %v1700 = vpop.f32.mrf.mxu0
        %v1701 = vpop.f32.mrf.mxu0
        %v1702 = vadd.f32 %v1446, %v1701
        %v1703 = vpop.f32.mrf.mxu0
        %1704 = vdwg.mxu0
        %vm1705 = vcmp.gt.f32.partialorder %v1579, 0.0
        %vm1706 = vcmp.gt.f32.partialorder %v1582, 0.0
        %vm1707 = vcmp.gt.f32.partialorder %v1587, 0.0
        %vm1708 = vcmp.gt.f32.partialorder %v1590, 0.0
        %vm1709 = vcmp.gt.f32.partialorder %v1595, 0.0
        %vm1710 = vcmp.gt.f32.partialorder %v1598, 0.0
        %vm1711 = vcmp.gt.f32.partialorder %v1603, 0.0
        %vm1712 = vcmp.gt.f32.partialorder %v1606, 0.0
        %vm1713 = vcmp.gt.f32.partialorder %v1611, 0.0
        %vm1714 = vcmp.gt.f32.partialorder %v1614, 0.0
        %vm1715 = vcmp.gt.f32.partialorder %v1619, 0.0
        %vm1716 = vcmp.gt.f32.partialorder %v1622, 0.0
        %vm1717 = vcmp.gt.f32.partialorder %v1627, 0.0
        %vm1718 = vcmp.gt.f32.partialorder %v1630, 0.0
        %vm1719 = vcmp.gt.f32.partialorder %v1635, 0.0
        %vm1720 = vcmp.gt.f32.partialorder %v1638, 0.0
        %vm1721 = vcmp.gt.f32.partialorder %v1643, 0.0
        %vm1722 = vcmp.gt.f32.partialorder %v1646, 0.0
        %vm1723 = vcmp.gt.f32.partialorder %v1651, 0.0
        %vm1724 = vcmp.gt.f32.partialorder %v1654, 0.0
        %vm1725 = vcmp.gt.f32.partialorder %v1659, 0.0
        %vm1726 = vcmp.gt.f32.partialorder %v1662, 0.0
        %vm1727 = vcmp.gt.f32.partialorder %v1667, 0.0
        %vm1728 = vcmp.gt.f32.partialorder %v1670, 0.0
        %vm1729 = vcmp.gt.f32.partialorder %v1675, 0.0
        %vm1730 = vcmp.gt.f32.partialorder %v1678, 0.0
        %vm1731 = vcmp.gt.f32.partialorder %v1683, 0.0
        %vm1732 = vcmp.gt.f32.partialorder %v1686, 0.0
        %vm1733 = vcmp.gt.f32.partialorder %v1691, 0.0
        %vm1734 = vcmp.gt.f32.partialorder %v1694, 0.0
        %vm1735 = vcmp.gt.f32.partialorder %v1699, 0.0
        %vm1736 = vcmp.gt.f32.partialorder %v1702, 0.0
        %v1737 = vmul.f32 %v1579, 0.01
        %v1738 = vmul.f32 %v1582, 0.01
        %v1739 = vmul.f32 %v1587, 0.01
        %v1740 = vmul.f32 %v1590, 0.01
        %v1741 = vmul.f32 %v1595, 0.01
        %v1742 = vmul.f32 %v1598, 0.01
        %v1743 = vmul.f32 %v1603, 0.01
        %v1744 = vmul.f32 %v1606, 0.01
        %v1745 = vmul.f32 %v1611, 0.01
        %v1746 = vmul.f32 %v1614, 0.01
        %v1747 = vmul.f32 %v1619, 0.01
        %v1748 = vmul.f32 %v1622, 0.01
        %v1749 = vmul.f32 %v1627, 0.01
        %v1750 = vmul.f32 %v1630, 0.01
        %v1751 = vmul.f32 %v1635, 0.01
        %v1752 = vmul.f32 %v1638, 0.01
        %v1753 = vmul.f32 %v1643, 0.01
        %v1754 = vmul.f32 %v1646, 0.01
        %v1755 = vmul.f32 %v1651, 0.01
        %v1756 = vmul.f32 %v1654, 0.01
        %v1757 = vmul.f32 %v1659, 0.01
        %v1758 = vmul.f32 %v1662, 0.01
        %v1759 = vmul.f32 %v1667, 0.01
        %v1760 = vmul.f32 %v1670, 0.01
        %v1761 = vmul.f32 %v1675, 0.01
        %v1762 = vmul.f32 %v1678, 0.01
        %v1763 = vmul.f32 %v1683, 0.01
        %v1764 = vmul.f32 %v1686, 0.01
        %v1765 = vmul.f32 %v1691, 0.01
        %v1766 = vmul.f32 %v1694, 0.01
        %v1767 = vmul.f32 %v1699, 0.01
        %v1768 = vmul.f32 %v1702, 0.01
        %v1769 = vsel %vm1705, %v1579, %v1737
        %v1770 = vsel %vm1706, %v1582, %v1738
        %v1771 = vsel %vm1707, %v1587, %v1739
        %v1772 = vsel %vm1708, %v1590, %v1740
        %v1773 = vsel %vm1709, %v1595, %v1741
        %v1774 = vsel %vm1710, %v1598, %v1742
        %v1775 = vsel %vm1711, %v1603, %v1743
        %v1776 = vsel %vm1712, %v1606, %v1744
        %v1777 = vsel %vm1713, %v1611, %v1745
        %v1778 = vsel %vm1714, %v1614, %v1746
        %v1779 = vsel %vm1715, %v1619, %v1747
        %v1780 = vsel %vm1716, %v1622, %v1748
        %v1781 = vsel %vm1717, %v1627, %v1749
        %v1782 = vsel %vm1718, %v1630, %v1750
        %v1783 = vsel %vm1719, %v1635, %v1751
        %v1784 = vsel %vm1720, %v1638, %v1752
        %v1785 = vsel %vm1721, %v1643, %v1753
        %v1786 = vsel %vm1722, %v1646, %v1754
        %v1787 = vsel %vm1723, %v1651, %v1755
        %v1788 = vsel %vm1724, %v1654, %v1756
        %v1789 = vsel %vm1725, %v1659, %v1757
        %v1790 = vsel %vm1726, %v1662, %v1758
        %v1791 = vsel %vm1727, %v1667, %v1759
        %v1792 = vsel %vm1728, %v1670, %v1760
        %v1793 = vsel %vm1729, %v1675, %v1761
        %v1794 = vsel %vm1730, %v1678, %v1762
        %v1795 = vsel %vm1731, %v1683, %v1763
        %v1796 = vsel %vm1732, %v1686, %v1764
        %v1797 = vsel %vm1733, %v1691, %v1765
        %v1798 = vsel %vm1734, %v1694, %v1766
        %v1799 = vsel %vm1735, %v1699, %v1767
        %v1800 = vsel %vm1736, %v1702, %v1768
        %v1801 = vpack.c.bf16 %v1770, %v1769
        %v1802 = vpack.c.bf16 %v1772, %v1771
        %v1803 = vpack.c.bf16 %v1774, %v1773
        %v1804 = vpack.c.bf16 %v1776, %v1775
        %v1805 = vpack.c.bf16 %v1778, %v1777
        %v1806 = vpack.c.bf16 %v1780, %v1779
        %v1807 = vpack.c.bf16 %v1782, %v1781
        %v1808 = vpack.c.bf16 %v1784, %v1783
        %v1809 = vpack.c.bf16 %v1786, %v1785
        %v1810 = vpack.c.bf16 %v1788, %v1787
        %v1811 = vpack.c.bf16 %v1790, %v1789
        %v1812 = vpack.c.bf16 %v1792, %v1791
        %v1813 = vpack.c.bf16 %v1794, %v1793
        %v1814 = vpack.c.bf16 %v1796, %v1795
        %v1815 = vpack.c.bf16 %v1798, %v1797
        %v1816 = vpack.c.bf16 %v1800, %v1799
        %v1817 = vld [vmem:[#allocation10] sm:$0xf]
        %v1818 = vld [vmem:[#allocation10 + $0x4] sm:$0xf]
        %v1819 = vld [vmem:[#allocation10 + $0x8] sm:$0xf]
        %v1820 = vld [vmem:[#allocation10 + $0xc] sm:$0xf]
        %v1821 = vld [vmem:[#allocation10 + $0x10] sm:$0xf]
        %v1822 = vld [vmem:[#allocation10 + $0x14] sm:$0xf]
        %v1823 = vld [vmem:[#allocation10 + $0x18] sm:$0xf]
        %v1824 = vld [vmem:[#allocation10 + $0x1c] sm:$0xf]
        %v1825 = vld [vmem:[#allocation10 + $0x20] sm:$0xf]
        %v1826 = vld [vmem:[#allocation10 + $0x24] sm:$0xf]
        %v1827 = vld [vmem:[#allocation10 + $0x28] sm:$0xf]
        %v1828 = vld [vmem:[#allocation10 + $0x2c] sm:$0xf]
        %v1829 = vld [vmem:[#allocation10 + $0x30] sm:$0xf]
        %v1830 = vld [vmem:[#allocation10 + $0x34] sm:$0xf]
        %v1831 = vld [vmem:[#allocation10 + $0x38] sm:$0xf]
        %v1832 = vld [vmem:[#allocation10 + $0x3c] sm:$0xf]
        %v1833 = vld [vmem:[%s8] sm:$0x1]
        %v1835 = vlaneseq
        %v1836 = vshrl.u32 %v1835, 7
        %v1837 = vsub.s32 0, %v1836
        %v1838 = vrot.slane %v1833, %v1837
        %v1856 = vunpack.c.l.b16 %v1817
        %v1857 = vunpack.c.l.b16 %v1818
        %v1858 = vunpack.c.l.b16 %v1819
        %v1859 = vunpack.c.l.b16 %v1820
        %v1860 = vunpack.c.l.b16 %v1821
        %v1861 = vunpack.c.l.b16 %v1822
        %v1862 = vunpack.c.l.b16 %v1823
        %v1863 = vunpack.c.l.b16 %v1824
        %v1864 = vunpack.c.l.b16 %v1825
        %v1865 = vunpack.c.l.b16 %v1826
        %v1866 = vunpack.c.l.b16 %v1827
        %v1867 = vunpack.c.l.b16 %v1828
        %v1868 = vunpack.c.l.b16 %v1829
        %v1869 = vunpack.c.l.b16 %v1830
        %v1870 = vunpack.c.l.b16 %v1831
        %v1871 = vunpack.c.l.b16 %v1832
        %v1872 = vpack.c.b16 %v1857, %v1856
        %v1873 = vpack.c.b16 %v1859, %v1858
        %v1874 = vpack.c.b16 %v1861, %v1860
        %v1875 = vpack.c.b16 %v1863, %v1862
        %v1876 = vpack.c.b16 %v1865, %v1864
        %v1877 = vpack.c.b16 %v1867, %v1866
        %v1878 = vpack.c.b16 %v1869, %v1868
        %v1879 = vpack.c.b16 %v1871, %v1870
        %1888 = vmatprep.subr.bf16.mxu0 0
        %1889 = vmatpush1.bf16.msra.mxu0 %v1879
        %1890 = vmatprep.subr.bf16.mxu0 0
        %1891 = vmatpush1.bf16.msra.mxu0 %v1878
        %1892 = vmatprep.subr.bf16.mxu0 0
        %1893 = vmatpush1.bf16.msra.mxu0 %v1877
        %1894 = vmatprep.subr.bf16.mxu0 0
        %1895 = vmatpush1.bf16.msra.mxu0 %v1876
        %1896 = vmatprep.subr.bf16.mxu0 0
        %1897 = vmatpush1.bf16.msra.mxu0 %v1875
        %1898 = vmatprep.subr.bf16.mxu0 0
        %1899 = vmatpush1.bf16.msra.mxu0 %v1874
        %1900 = vmatprep.subr.bf16.mxu0 0
        %1901 = vmatpush1.bf16.msra.mxu0 %v1873
        %1902 = vmatprep.subr.bf16.mxu0 0
        %1903 = vmatpush1.bf16.msra.mxu0 %v1872
        %1904 = vmatprep.subr.bf16.mxu0 0
        %1905 = vmatpush2.bf16.msra.mxu0 0
        %1906 = vmatprep.subr.bf16.mxu0 0
        %1907 = vmatpush2.bf16.msra.mxu0 0
        %1908 = vmatprep.subr.bf16.mxu0 0
        %1909 = vmatpush2.bf16.msra.mxu0 0
        %1910 = vmatprep.subr.bf16.mxu0 0
        %1911 = vmatpush2.bf16.msra.mxu0 0
        %1912 = vmatprep.subr.bf16.mxu0 0
        %1913 = vmatpush2.bf16.msra.mxu0 0
        %1914 = vmatprep.subr.bf16.mxu0 0
        %1915 = vmatpush2.bf16.msra.mxu0 0
        %1916 = vmatprep.subr.bf16.mxu0 0
        %1917 = vmatpush2.bf16.msra.mxu0 0
        %1918 = vmatprep.subr.bf16.mxu0 0
        %1919 = vmatpush2.bf16.msra.mxu0 0
        %1920 = vmatprep.mubr.bf16.mxu0 0
        %1921 = vmatmul.mubr.bf16.gmra.mxu0 %v1801
        %v1922 = vpop.f32.mrf.mxu0
        %v1923 = vadd.f32 %v1838, %v1922
        %v1924 = vpop.f32.mrf.mxu0
        %v1925 = vpop.f32.mrf.mxu0
        %v1926 = vadd.f32 %v1838, %v1925
        %v1927 = vpop.f32.mrf.mxu0
        %1928 = vmatprep.mubr.bf16.mxu0 0
        %1929 = vmatmul.mubr.bf16.gmra.mxu0 %v1802
        %v1930 = vpop.f32.mrf.mxu0
        %v1931 = vadd.f32 %v1838, %v1930
        %v1932 = vpop.f32.mrf.mxu0
        %v1933 = vpop.f32.mrf.mxu0
        %v1934 = vadd.f32 %v1838, %v1933
        %v1935 = vpop.f32.mrf.mxu0
        %1936 = vmatprep.mubr.bf16.mxu0 0
        %1937 = vmatmul.mubr.bf16.gmra.mxu0 %v1803
        %v1938 = vpop.f32.mrf.mxu0
        %v1939 = vadd.f32 %v1838, %v1938
        %v1940 = vpop.f32.mrf.mxu0
        %v1941 = vpop.f32.mrf.mxu0
        %v1942 = vadd.f32 %v1838, %v1941
        %v1943 = vpop.f32.mrf.mxu0
        %1944 = vmatprep.mubr.bf16.mxu0 0
        %1945 = vmatmul.mubr.bf16.gmra.mxu0 %v1804
        %v1946 = vpop.f32.mrf.mxu0
        %v1947 = vadd.f32 %v1838, %v1946
        %v1948 = vpop.f32.mrf.mxu0
        %v1949 = vpop.f32.mrf.mxu0
        %v1950 = vadd.f32 %v1838, %v1949
        %v1951 = vpop.f32.mrf.mxu0
        %1952 = vmatprep.mubr.bf16.mxu0 0
        %1953 = vmatmul.mubr.bf16.gmra.mxu0 %v1805
        %v1954 = vpop.f32.mrf.mxu0
        %v1955 = vadd.f32 %v1838, %v1954
        %v1956 = vpop.f32.mrf.mxu0
        %v1957 = vpop.f32.mrf.mxu0
        %v1958 = vadd.f32 %v1838, %v1957
        %v1959 = vpop.f32.mrf.mxu0
        %1960 = vmatprep.mubr.bf16.mxu0 0
        %1961 = vmatmul.mubr.bf16.gmra.mxu0 %v1806
        %v1962 = vpop.f32.mrf.mxu0
        %v1963 = vadd.f32 %v1838, %v1962
        %v1964 = vpop.f32.mrf.mxu0
        %v1965 = vpop.f32.mrf.mxu0
        %v1966 = vadd.f32 %v1838, %v1965
        %v1967 = vpop.f32.mrf.mxu0
        %1968 = vmatprep.mubr.bf16.mxu0 0
        %1969 = vmatmul.mubr.bf16.gmra.mxu0 %v1807
        %v1970 = vpop.f32.mrf.mxu0
        %v1971 = vadd.f32 %v1838, %v1970
        %v1972 = vpop.f32.mrf.mxu0
        %v1973 = vpop.f32.mrf.mxu0
        %v1974 = vadd.f32 %v1838, %v1973
        %v1975 = vpop.f32.mrf.mxu0
        %1976 = vmatprep.mubr.bf16.mxu0 0
        %1977 = vmatmul.mubr.bf16.gmra.mxu0 %v1808
        %v1978 = vpop.f32.mrf.mxu0
        %v1979 = vadd.f32 %v1838, %v1978
        %v1980 = vpop.f32.mrf.mxu0
        %v1981 = vpop.f32.mrf.mxu0
        %v1982 = vadd.f32 %v1838, %v1981
        %v1983 = vpop.f32.mrf.mxu0
        %1984 = vmatprep.mubr.bf16.mxu0 0
        %1985 = vmatmul.mubr.bf16.gmra.mxu0 %v1809
        %v1986 = vpop.f32.mrf.mxu0
        %v1987 = vadd.f32 %v1838, %v1986
        %v1988 = vpop.f32.mrf.mxu0
        %v1989 = vpop.f32.mrf.mxu0
        %v1990 = vadd.f32 %v1838, %v1989
        %v1991 = vpop.f32.mrf.mxu0
        %1992 = vmatprep.mubr.bf16.mxu0 0
        %1993 = vmatmul.mubr.bf16.gmra.mxu0 %v1810
        %v1994 = vpop.f32.mrf.mxu0
        %v1995 = vadd.f32 %v1838, %v1994
        %v1996 = vpop.f32.mrf.mxu0
        %v1997 = vpop.f32.mrf.mxu0
        %v1998 = vadd.f32 %v1838, %v1997
        %v1999 = vpop.f32.mrf.mxu0
        %2000 = vmatprep.mubr.bf16.mxu0 0
        %2001 = vmatmul.mubr.bf16.gmra.mxu0 %v1811
        %v2002 = vpop.f32.mrf.mxu0
        %v2003 = vadd.f32 %v1838, %v2002
        %v2004 = vpop.f32.mrf.mxu0
        %v2005 = vpop.f32.mrf.mxu0
        %v2006 = vadd.f32 %v1838, %v2005
        %v2007 = vpop.f32.mrf.mxu0
        %2008 = vmatprep.mubr.bf16.mxu0 0
        %2009 = vmatmul.mubr.bf16.gmra.mxu0 %v1812
        %v2010 = vpop.f32.mrf.mxu0
        %v2011 = vadd.f32 %v1838, %v2010
        %v2012 = vpop.f32.mrf.mxu0
        %v2013 = vpop.f32.mrf.mxu0
        %v2014 = vadd.f32 %v1838, %v2013
        %v2015 = vpop.f32.mrf.mxu0
        %2016 = vmatprep.mubr.bf16.mxu0 0
        %2017 = vmatmul.mubr.bf16.gmra.mxu0 %v1813
        %v2018 = vpop.f32.mrf.mxu0
        %v2019 = vadd.f32 %v1838, %v2018
        %v2020 = vpop.f32.mrf.mxu0
        %v2021 = vpop.f32.mrf.mxu0
        %v2022 = vadd.f32 %v1838, %v2021
        %v2023 = vpop.f32.mrf.mxu0
        %2024 = vmatprep.mubr.bf16.mxu0 0
        %2025 = vmatmul.mubr.bf16.gmra.mxu0 %v1814
        %v2026 = vpop.f32.mrf.mxu0
        %v2027 = vadd.f32 %v1838, %v2026
        %v2028 = vpop.f32.mrf.mxu0
        %v2029 = vpop.f32.mrf.mxu0
        %v2030 = vadd.f32 %v1838, %v2029
        %v2031 = vpop.f32.mrf.mxu0
        %2032 = vmatprep.mubr.bf16.mxu0 0
        %2033 = vmatmul.mubr.bf16.gmra.mxu0 %v1815
        %v2034 = vpop.f32.mrf.mxu0
        %v2035 = vadd.f32 %v1838, %v2034
        %v2036 = vpop.f32.mrf.mxu0
        %v2037 = vpop.f32.mrf.mxu0
        %v2038 = vadd.f32 %v1838, %v2037
        %v2039 = vpop.f32.mrf.mxu0
        %2040 = vmatprep.mubr.bf16.mxu0 0
        %2041 = vmatmul.mubr.bf16.gmra.mxu0 %v1816
        %v2042 = vpop.f32.mrf.mxu0
        %v2043 = vadd.f32 %v1838, %v2042
        %v2044 = vpop.f32.mrf.mxu0
        %v2045 = vpop.f32.mrf.mxu0
        %v2046 = vadd.f32 %v1838, %v2045
        %v2047 = vpop.f32.mrf.mxu0
        %2048 = vdwg.mxu0
        %v2049 = vlaneseq
        %v2050 = vand.u32 %v2049, 127
        %vm2051 = vcmp.lt.s32.totalorder %v2050, 8
        %v2052 = vsel %vm2051, %v1923, -inf
        %v2053 = vsel %vm2051, %v1926, -inf
        %v2054 = vsel %vm2051, %v1931, -inf
        %v2055 = vsel %vm2051, %v1934, -inf
        %v2056 = vsel %vm2051, %v1939, -inf
        %v2057 = vsel %vm2051, %v1942, -inf
        %v2058 = vsel %vm2051, %v1947, -inf
        %v2059 = vsel %vm2051, %v1950, -inf
        %v2060 = vsel %vm2051, %v1955, -inf
        %v2061 = vsel %vm2051, %v1958, -inf
        %v2062 = vsel %vm2051, %v1963, -inf
        %v2063 = vsel %vm2051, %v1966, -inf
        %v2064 = vsel %vm2051, %v1971, -inf
        %v2065 = vsel %vm2051, %v1974, -inf
        %v2066 = vsel %vm2051, %v1979, -inf
        %v2067 = vsel %vm2051, %v1982, -inf
        %v2068 = vsel %vm2051, %v1987, -inf
        %v2069 = vsel %vm2051, %v1990, -inf
        %v2070 = vsel %vm2051, %v1995, -inf
        %v2071 = vsel %vm2051, %v1998, -inf
        %v2072 = vsel %vm2051, %v2003, -inf
        %v2073 = vsel %vm2051, %v2006, -inf
        %v2074 = vsel %vm2051, %v2011, -inf
        %v2075 = vsel %vm2051, %v2014, -inf
        %v2076 = vsel %vm2051, %v2019, -inf
        %v2077 = vsel %vm2051, %v2022, -inf
        %v2078 = vsel %vm2051, %v2027, -inf
        %v2079 = vsel %vm2051, %v2030, -inf
        %v2080 = vsel %vm2051, %v2035, -inf
        %v2081 = vsel %vm2051, %v2038, -inf
        %v2082 = vsel %vm2051, %v2043, -inf
        %v2083 = vsel %vm2051, %v2046, -inf
        %2084 = vmax.xlane.f32.xlu0 %v2052
        %v2085 = vpop.xlane.xlu0 %2084
        %2086 = vmax.xlane.f32.xlu0 %v2053
        %v2087 = vpop.xlane.xlu0 %2086
        %2088 = vmax.xlane.f32.xlu0 %v2054
        %v2089 = vpop.xlane.xlu0 %2088
        %2090 = vmax.xlane.f32.xlu0 %v2055
        %v2091 = vpop.xlane.xlu0 %2090
        %2092 = vmax.xlane.f32.xlu0 %v2056
        %v2093 = vpop.xlane.xlu0 %2092
        %2094 = vmax.xlane.f32.xlu0 %v2057
        %v2095 = vpop.xlane.xlu0 %2094
        %2096 = vmax.xlane.f32.xlu0 %v2058
        %v2097 = vpop.xlane.xlu0 %2096
        %2098 = vmax.xlane.f32.xlu0 %v2059
        %v2099 = vpop.xlane.xlu0 %2098
        %2100 = vmax.xlane.f32.xlu0 %v2060
        %v2101 = vpop.xlane.xlu0 %2100
        %2102 = vmax.xlane.f32.xlu0 %v2061
        %v2103 = vpop.xlane.xlu0 %2102
        %2104 = vmax.xlane.f32.xlu0 %v2062
        %v2105 = vpop.xlane.xlu0 %2104
        %2106 = vmax.xlane.f32.xlu0 %v2063
        %v2107 = vpop.xlane.xlu0 %2106
        %2108 = vmax.xlane.f32.xlu0 %v2064
        %v2109 = vpop.xlane.xlu0 %2108
        %2110 = vmax.xlane.f32.xlu0 %v2065
        %v2111 = vpop.xlane.xlu0 %2110
        %2112 = vmax.xlane.f32.xlu0 %v2066
        %v2113 = vpop.xlane.xlu0 %2112
        %2114 = vmax.xlane.f32.xlu0 %v2067
        %v2115 = vpop.xlane.xlu0 %2114
        %2116 = vmax.xlane.f32.xlu0 %v2068
        %v2117 = vpop.xlane.xlu0 %2116
        %2118 = vmax.xlane.f32.xlu0 %v2069
        %v2119 = vpop.xlane.xlu0 %2118
        %2120 = vmax.xlane.f32.xlu0 %v2070
        %v2121 = vpop.xlane.xlu0 %2120
        %2122 = vmax.xlane.f32.xlu0 %v2071
        %v2123 = vpop.xlane.xlu0 %2122
        %2124 = vmax.xlane.f32.xlu0 %v2072
        %v2125 = vpop.xlane.xlu0 %2124
        %2126 = vmax.xlane.f32.xlu0 %v2073
        %v2127 = vpop.xlane.xlu0 %2126
        %2128 = vmax.xlane.f32.xlu0 %v2074
        %v2129 = vpop.xlane.xlu0 %2128
        %2130 = vmax.xlane.f32.xlu0 %v2075
        %v2131 = vpop.xlane.xlu0 %2130
        %2132 = vmax.xlane.f32.xlu0 %v2076
        %v2133 = vpop.xlane.xlu0 %2132
        %2134 = vmax.xlane.f32.xlu0 %v2077
        %v2135 = vpop.xlane.xlu0 %2134
        %2136 = vmax.xlane.f32.xlu0 %v2078
        %v2137 = vpop.xlane.xlu0 %2136
        %2138 = vmax.xlane.f32.xlu0 %v2079
        %v2139 = vpop.xlane.xlu0 %2138
        %2140 = vmax.xlane.f32.xlu0 %v2080
        %v2141 = vpop.xlane.xlu0 %2140
        %2142 = vmax.xlane.f32.xlu0 %v2081
        %v2143 = vpop.xlane.xlu0 %2142
        %2144 = vmax.xlane.f32.xlu0 %v2082
        %v2145 = vpop.xlane.xlu0 %2144
        %2146 = vmax.xlane.f32.xlu0 %v2083
        %v2147 = vpop.xlane.xlu0 %2146
        %v2148 = vsub.f32 %v2052, %v2085
        %v2149 = vsub.f32 %v2053, %v2087
        %v2150 = vsub.f32 %v2054, %v2089
        %v2151 = vsub.f32 %v2055, %v2091
        %v2152 = vsub.f32 %v2056, %v2093
        %v2153 = vsub.f32 %v2057, %v2095
        %v2154 = vsub.f32 %v2058, %v2097
        %v2155 = vsub.f32 %v2059, %v2099
        %v2156 = vsub.f32 %v2060, %v2101
        %v2157 = vsub.f32 %v2061, %v2103
        %v2158 = vsub.f32 %v2062, %v2105
        %v2159 = vsub.f32 %v2063, %v2107
        %v2160 = vsub.f32 %v2064, %v2109
        %v2161 = vsub.f32 %v2065, %v2111
        %v2162 = vsub.f32 %v2066, %v2113
        %v2163 = vsub.f32 %v2067, %v2115
        %v2164 = vsub.f32 %v2068, %v2117
        %v2165 = vsub.f32 %v2069, %v2119
        %v2166 = vsub.f32 %v2070, %v2121
        %v2167 = vsub.f32 %v2071, %v2123
        %v2168 = vsub.f32 %v2072, %v2125
        %v2169 = vsub.f32 %v2073, %v2127
        %v2170 = vsub.f32 %v2074, %v2129
        %v2171 = vsub.f32 %v2075, %v2131
        %v2172 = vsub.f32 %v2076, %v2133
        %v2173 = vsub.f32 %v2077, %v2135
        %v2174 = vsub.f32 %v2078, %v2137
        %v2175 = vsub.f32 %v2079, %v2139
        %v2176 = vsub.f32 %v2080, %v2141
        %v2177 = vsub.f32 %v2081, %v2143
        %v2178 = vsub.f32 %v2082, %v2145
        %v2179 = vsub.f32 %v2083, %v2147
        %v2180 = vmul.f32 %v2148, 1.442695
        %v2181 = vpow.pop %v2180
        %v2182 = vmul.f32 %v2149, 1.442695
        %v2183 = vpow.pop %v2182
        %v2184 = vmul.f32 %v2150, 1.442695
        %v2185 = vpow.pop %v2184
        %v2186 = vmul.f32 %v2151, 1.442695
        %v2187 = vpow.pop %v2186
        %v2188 = vmul.f32 %v2152, 1.442695
        %v2189 = vpow.pop %v2188
        %v2190 = vmul.f32 %v2153, 1.442695
        %v2191 = vpow.pop %v2190
        %v2192 = vmul.f32 %v2154, 1.442695
        %v2193 = vpow.pop %v2192
        %v2194 = vmul.f32 %v2155, 1.442695
        %v2195 = vpow.pop %v2194
        %v2196 = vmul.f32 %v2156, 1.442695
        %v2197 = vpow.pop %v2196
        %v2198 = vmul.f32 %v2157, 1.442695
        %v2199 = vpow.pop %v2198
        %v2200 = vmul.f32 %v2158, 1.442695
        %v2201 = vpow.pop %v2200
        %v2202 = vmul.f32 %v2159, 1.442695
        %v2203 = vpow.pop %v2202
        %v2204 = vmul.f32 %v2160, 1.442695
        %v2205 = vpow.pop %v2204
        %v2206 = vmul.f32 %v2161, 1.442695
        %v2207 = vpow.pop %v2206
        %v2208 = vmul.f32 %v2162, 1.442695
        %v2209 = vpow.pop %v2208
        %v2210 = vmul.f32 %v2163, 1.442695
        %v2211 = vpow.pop %v2210
        %v2212 = vmul.f32 %v2164, 1.442695
        %v2213 = vpow.pop %v2212
        %v2214 = vmul.f32 %v2165, 1.442695
        %v2215 = vpow.pop %v2214
        %v2216 = vmul.f32 %v2166, 1.442695
        %v2217 = vpow.pop %v2216
        %v2218 = vmul.f32 %v2167, 1.442695
        %v2219 = vpow.pop %v2218
        %v2220 = vmul.f32 %v2168, 1.442695
        %v2221 = vpow.pop %v2220
        %v2222 = vmul.f32 %v2169, 1.442695
        %v2223 = vpow.pop %v2222
        %v2224 = vmul.f32 %v2170, 1.442695
        %v2225 = vpow.pop %v2224
        %v2226 = vmul.f32 %v2171, 1.442695
        %v2227 = vpow.pop %v2226
        %v2228 = vmul.f32 %v2172, 1.442695
        %v2229 = vpow.pop %v2228
        %v2230 = vmul.f32 %v2173, 1.442695
        %v2231 = vpow.pop %v2230
        %v2232 = vmul.f32 %v2174, 1.442695
        %v2233 = vpow.pop %v2232
        %v2234 = vmul.f32 %v2175, 1.442695
        %v2235 = vpow.pop %v2234
        %v2236 = vmul.f32 %v2176, 1.442695
        %v2237 = vpow.pop %v2236
        %v2238 = vmul.f32 %v2177, 1.442695
        %v2239 = vpow.pop %v2238
        %v2240 = vmul.f32 %v2178, 1.442695
        %v2241 = vpow.pop %v2240
        %v2242 = vmul.f32 %v2179, 1.442695
        %v2243 = vpow.pop %v2242
        %2244 = vadd.xlane.f32.xlu0 %v2181
        %v2245 = vpop.xlane.xlu0 %2244
        %2246 = vadd.xlane.f32.xlu0 %v2183
        %v2247 = vpop.xlane.xlu0 %2246
        %2248 = vadd.xlane.f32.xlu0 %v2185
        %v2249 = vpop.xlane.xlu0 %2248
        %2250 = vadd.xlane.f32.xlu0 %v2187
        %v2251 = vpop.xlane.xlu0 %2250
        %2252 = vadd.xlane.f32.xlu0 %v2189
        %v2253 = vpop.xlane.xlu0 %2252
        %2254 = vadd.xlane.f32.xlu0 %v2191
        %v2255 = vpop.xlane.xlu0 %2254
        %2256 = vadd.xlane.f32.xlu0 %v2193
        %v2257 = vpop.xlane.xlu0 %2256
        %2258 = vadd.xlane.f32.xlu0 %v2195
        %v2259 = vpop.xlane.xlu0 %2258
        %2260 = vadd.xlane.f32.xlu0 %v2197
        %v2261 = vpop.xlane.xlu0 %2260
        %2262 = vadd.xlane.f32.xlu0 %v2199
        %v2263 = vpop.xlane.xlu0 %2262
        %2264 = vadd.xlane.f32.xlu0 %v2201
        %v2265 = vpop.xlane.xlu0 %2264
        %2266 = vadd.xlane.f32.xlu0 %v2203
        %v2267 = vpop.xlane.xlu0 %2266
        %2268 = vadd.xlane.f32.xlu0 %v2205
        %v2269 = vpop.xlane.xlu0 %2268
        %2270 = vadd.xlane.f32.xlu0 %v2207
        %v2271 = vpop.xlane.xlu0 %2270
        %2272 = vadd.xlane.f32.xlu0 %v2209
        %v2273 = vpop.xlane.xlu0 %2272
        %2274 = vadd.xlane.f32.xlu0 %v2211
        %v2275 = vpop.xlane.xlu0 %2274
        %2276 = vadd.xlane.f32.xlu0 %v2213
        %v2277 = vpop.xlane.xlu0 %2276
        %2278 = vadd.xlane.f32.xlu0 %v2215
        %v2279 = vpop.xlane.xlu0 %2278
        %2280 = vadd.xlane.f32.xlu0 %v2217
        %v2281 = vpop.xlane.xlu0 %2280
        %2282 = vadd.xlane.f32.xlu0 %v2219
        %v2283 = vpop.xlane.xlu0 %2282
        %2284 = vadd.xlane.f32.xlu0 %v2221
        %v2285 = vpop.xlane.xlu0 %2284
        %2286 = vadd.xlane.f32.xlu0 %v2223
        %v2287 = vpop.xlane.xlu0 %2286
        %2288 = vadd.xlane.f32.xlu0 %v2225
        %v2289 = vpop.xlane.xlu0 %2288
        %2290 = vadd.xlane.f32.xlu0 %v2227
        %v2291 = vpop.xlane.xlu0 %2290
        %2292 = vadd.xlane.f32.xlu0 %v2229
        %v2293 = vpop.xlane.xlu0 %2292
        %2294 = vadd.xlane.f32.xlu0 %v2231
        %v2295 = vpop.xlane.xlu0 %2294
        %2296 = vadd.xlane.f32.xlu0 %v2233
        %v2297 = vpop.xlane.xlu0 %2296
        %2298 = vadd.xlane.f32.xlu0 %v2235
        %v2299 = vpop.xlane.xlu0 %2298
        %2300 = vadd.xlane.f32.xlu0 %v2237
        %v2301 = vpop.xlane.xlu0 %2300
        %2302 = vadd.xlane.f32.xlu0 %v2239
        %v2303 = vpop.xlane.xlu0 %2302
        %2304 = vadd.xlane.f32.xlu0 %v2241
        %v2305 = vpop.xlane.xlu0 %2304
        %2306 = vadd.xlane.f32.xlu0 %v2243
        %v2307 = vpop.xlane.xlu0 %2306
        %v2308 = vrcp.pop %v2245
        %v2309 = vrcp.pop %v2247
        %v2310 = vrcp.pop %v2249
        %v2311 = vrcp.pop %v2251
        %v2312 = vrcp.pop %v2253
        %v2313 = vrcp.pop %v2255
        %v2314 = vrcp.pop %v2257
        %v2315 = vrcp.pop %v2259
        %v2316 = vrcp.pop %v2261
        %v2317 = vrcp.pop %v2263
        %v2318 = vrcp.pop %v2265
        %v2319 = vrcp.pop %v2267
        %v2320 = vrcp.pop %v2269
        %v2321 = vrcp.pop %v2271
        %v2322 = vrcp.pop %v2273
        %v2323 = vrcp.pop %v2275
        %v2324 = vrcp.pop %v2277
        %v2325 = vrcp.pop %v2279
        %v2326 = vrcp.pop %v2281
        %v2327 = vrcp.pop %v2283
        %v2328 = vrcp.pop %v2285
        %v2329 = vrcp.pop %v2287
        %v2330 = vrcp.pop %v2289
        %v2331 = vrcp.pop %v2291
        %v2332 = vrcp.pop %v2293
        %v2333 = vrcp.pop %v2295
        %v2334 = vrcp.pop %v2297
        %v2335 = vrcp.pop %v2299
        %v2336 = vrcp.pop %v2301
        %v2337 = vrcp.pop %v2303
        %v2338 = vrcp.pop %v2305
        %v2339 = vrcp.pop %v2307
        %v2340 = vmul.f32 %v2181, %v2308
        %v2341 = vmul.f32 %v2183, %v2309
        %v2342 = vmul.f32 %v2185, %v2310
        %v2343 = vmul.f32 %v2187, %v2311
        %v2344 = vmul.f32 %v2189, %v2312
        %v2345 = vmul.f32 %v2191, %v2313
        %v2346 = vmul.f32 %v2193, %v2314
        %v2347 = vmul.f32 %v2195, %v2315
        %v2348 = vmul.f32 %v2197, %v2316
        %v2349 = vmul.f32 %v2199, %v2317
        %v2350 = vmul.f32 %v2201, %v2318
        %v2351 = vmul.f32 %v2203, %v2319
        %v2352 = vmul.f32 %v2205, %v2320
        %v2353 = vmul.f32 %v2207, %v2321
        %v2354 = vmul.f32 %v2209, %v2322
        %v2355 = vmul.f32 %v2211, %v2323
        %v2356 = vmul.f32 %v2213, %v2324
        %v2357 = vmul.f32 %v2215, %v2325
        %v2358 = vmul.f32 %v2217, %v2326
        %v2359 = vmul.f32 %v2219, %v2327
        %v2360 = vmul.f32 %v2221, %v2328
        %v2361 = vmul.f32 %v2223, %v2329
        %v2362 = vmul.f32 %v2225, %v2330
        %v2363 = vmul.f32 %v2227, %v2331
        %v2364 = vmul.f32 %v2229, %v2332
        %v2365 = vmul.f32 %v2231, %v2333
        %v2366 = vmul.f32 %v2233, %v2334
        %v2367 = vmul.f32 %v2235, %v2335
        %v2368 = vmul.f32 %v2237, %v2336
        %v2369 = vmul.f32 %v2239, %v2337
        %v2370 = vmul.f32 %v2241, %v2338
        %v2371 = vmul.f32 %v2243, %v2339
        %2372 = vst [vmem:[%s408] sm:$0xff] %v2340
        %2373 = vst [vmem:[%s408 + $0x8] sm:$0xff] %v2341
        %2374 = vst [vmem:[%s408 + $0x10] sm:$0xff] %v2342
        %2375 = vst [vmem:[%s408 + $0x18] sm:$0xff] %v2343
        %2376 = vst [vmem:[%s408 + $0x20] sm:$0xff] %v2344
        %2377 = vst [vmem:[%s408 + $0x28] sm:$0xff] %v2345
        %2378 = vst [vmem:[%s408 + $0x30] sm:$0xff] %v2346
        %2379 = vst [vmem:[%s408 + $0x38] sm:$0xff] %v2347
        %2380 = vst [vmem:[%s408 + $0x40] sm:$0xff] %v2348
        %2381 = vst [vmem:[%s408 + $0x48] sm:$0xff] %v2349
        %2382 = vst [vmem:[%s408 + $0x50] sm:$0xff] %v2350
        %2383 = vst [vmem:[%s408 + $0x58] sm:$0xff] %v2351
        %2384 = vst [vmem:[%s408 + $0x60] sm:$0xff] %v2352
        %2385 = vst [vmem:[%s408 + $0x68] sm:$0xff] %v2353
        %2386 = vst [vmem:[%s408 + $0x70] sm:$0xff] %v2354
        %2387 = vst [vmem:[%s408 + $0x78] sm:$0xff] %v2355
        %2388 = vst [vmem:[%s408 + $0x80] sm:$0xff] %v2356
        %2389 = vst [vmem:[%s408 + $0x88] sm:$0xff] %v2357
        %2390 = vst [vmem:[%s408 + $0x90] sm:$0xff] %v2358
        %2391 = vst [vmem:[%s408 + $0x98] sm:$0xff] %v2359
        %2392 = vst [vmem:[%s408 + $0xa0] sm:$0xff] %v2360
        %2393 = vst [vmem:[%s408 + $0xa8] sm:$0xff] %v2361
        %2394 = vst [vmem:[%s408 + $0xb0] sm:$0xff] %v2362
        %2395 = vst [vmem:[%s408 + $0xb8] sm:$0xff] %v2363
        %2396 = vst [vmem:[%s408 + $0xc0] sm:$0xff] %v2364
        %2397 = vst [vmem:[%s408 + $0xc8] sm:$0xff] %v2365
        %2398 = vst [vmem:[%s408 + $0xd0] sm:$0xff] %v2366
        %2399 = vst [vmem:[%s408 + $0xd8] sm:$0xff] %v2367
        %2400 = vst [vmem:[%s408 + $0xe0] sm:$0xff] %v2368
        %2401 = vst [vmem:[%s408 + $0xe8] sm:$0xff] %v2369
        %2402 = vst [vmem:[%s408 + $0xf0] sm:$0xff] %v2370
        %2403 = vst [vmem:[%s408 + $0xf8] sm:$0xff] %v2371
        %s2404 = sand.u32 %s230, 1
        %s2405 = scalar_lea.sflag [#allocation4], %s2404
        %s2406 = sand.u32 %s230, 1
        %s2407 = smul.addr %s2406, 256
        %s2408 = scalar_lea.vmem [#allocation11], %s2407
        // Predicated region
        $region77: #{tpu_custom_call.1} parent=55 // pred_check
          %p2409 = pneg %p240
        $region78: #{tpu_custom_call.1} parent=55 // pred_check_branch
          %2411 = sbr.rel (%p2409) target = $region80
        $region79: #{tpu_custom_call.1} parent=55 // pred_region
          %s2412 = smul.u32 32, %s28
          %s2414 = ssub.s32 4096, 4096
          %2415 = vsyncadd %s2405, %s2414
          %s2416 = smul.addr %s2412, 128
          %s2417 = scalar_lea.hbm %s9, %s2416
          %s2418 = sshll.u32 %s2408, 4
          %s2419 = int_to_ptr.vmem [resolvable:$true] %s2418
          %2424 = dma.vmem_to_hbm [thread:$0]  %s2419, 4096, %s2417, %s2405, 128, 128, 8
        $region80: #{tpu_custom_call.1} parent=55 // pred_fallthru
          _
      $region56: #{tpu_custom_call.1} parent=5 // pred_fallthru
        _
      %p2425 = scmp.le.s32.totalorder 2, %s23
      // Predicated region
      $region81: #{tpu_custom_call.1} parent=5 // pred_check
        %p2426 = pneg %p2425
      $region82: #{tpu_custom_call.1} parent=5 // pred_check_branch
        %2428 = sbr.rel (%p2426) target = $region84
      $region83: #{tpu_custom_call.1} parent=5 // pred_region
        %s2429 = ssub.s32 %s23, 2
        // Predicated region
        $region85: #{tpu_custom_call.1} parent=83 // pred_check
          %p2430 = pneg %p246
        $region86: #{tpu_custom_call.1} parent=83 // pred_check_branch
          %2432 = sbr.rel (%p2430) target = $region88
        $region87: #{tpu_custom_call.1} parent=83 // pred_region
          %s2433 = sand.u32 %s231, 1
          %s2434 = scalar_lea.sflag [#allocation4], %s2433
          %s2435 = sand.u32 %s231, 1
          %s2436 = smul.addr %s2435, 256
          %s2437 = scalar_lea.vmem [#allocation11], %s2436
          %2438 = dma.done %s2434, 4096
        $region88: #{tpu_custom_call.1} parent=83 // pred_fallthru
          _
      $region84: #{tpu_custom_call.1} parent=5 // pred_fallthru
        _
    $region6: #{tpu_custom_call.1} parent=1 // loop_footer
      %s27 = sadd.s32 1, %s23
    $region7: #{tpu_custom_call.1} parent=1 // loop_footer_branch
      %22 = sbr.rel target = $region3
    $region8: #{tpu_custom_call.1} parent=1 // loop_exit
      _
    %2439 = vsyncpa [#allocation3], 1
    %s2440 = scalar_lea.sflag [#allocation3], 1
    %2441 = vsyncpa %s2440, 1
    %2442 = vsyncpa [#allocation6], 1
    %2443 = vsyncpa [#allocation9], 1
    %2444 = vsyncpa [#allocation4], 1
    %s2445 = scalar_lea.sflag [#allocation4], 1
    %2446 = vsyncpa %s2445, 1

</llo_original>
